<compile_context>
chip_gen: v6e
topology: v6e:2x2x1
jax: 0.10.0
libtpu: 0.0.40
codegen_flags: <defaults>
</compile_context>

<pallas_src>
import numpy as np
import jax
import jax.numpy as jnp
from jax import lax
from jax.experimental import pallas as pl
from jax.experimental.pallas import tpu as pltpu

# ---------------------------------------------------------------------------
# Model hyper-parameters (consistent with the module's __init__).
# ---------------------------------------------------------------------------
D_MODEL   = 32
N_LAYER   = 2            # layer stack not implemented (DecoderLayer undefined)
N_HEAD    = 4
D_INNER   = 64
DROPOUT_P = 0.1          # identity in eval mode
N_ID      = 253          # id_embedding vocab
N_CAT     = 33 + 3       # category_embedding vocab
MAX_SEQ   = 2048         # PositionalEncoding table length

D_HALF    = D_MODEL // 2   # position_encoding output width (16)
D_QUART   = D_MODEL // 4   # embedding widths (8)

N_ID_PAD  = 256            # id one-hot width (MXU-friendly K)
N_CAT_PAD = 64             # category one-hot width
W_ROWS    = 8              # wpos rows: 3 weight rows + 1 bias row, padded to a sublane multiple


# ---------------------------------------------------------------------------
# Sinusoidal positional-encoding table (exactly mirrors PositionalEncoding).
# ---------------------------------------------------------------------------
def sinusoid_encoding_table(seq_length, d_hid):
    pos = np.arange(seq_length, dtype=np.float64)[:, None]           # [L, 1]
    hid = np.arange(d_hid, dtype=np.int64)[None, :]                  # [1, D]
    table = pos / np.power(10000.0, 2.0 * (hid // 2) / float(d_hid)) # [L, D]
    table[:, 0::2] = np.sin(table[:, 0::2])
    table[:, 1::2] = np.cos(table[:, 1::2])
    return jnp.asarray(table, dtype=jnp.float32)                     # [L, D]


# ---------------------------------------------------------------------------
# Pallas kernel: fused Linear + split one-hot embedding gathers + pos-enc add.
# One sequence tile (full batch folded into the block) per grid step.
# ---------------------------------------------------------------------------
def decoder_embed_kernel(pos_ref,   # [B, TS, 3]  f32
                         id_ref,    # [B, TS, 1]  int32
                         cat_ref,   # [B, TS, 1]  int32
                         wpos_ref,  # [8, 32]     f32  rows 0..2 = W, row 3 = bias (cols 0:16)
                         wid_ref,   # [256, 32]   f32  id table in cols 16:24, zero elsewhere
                         wcat_ref,  # [64, 32]    f32  cat table in cols 24:32, zero elsewhere
                         ptab_ref,  # [TS, 32]    f32  positional-encoding tile
                         out_ref):  # [B, TS, 32] f32
    b, ts, _ = pos_ref.shape
    n = b * ts                                   # TS is always a multiple of 8 -> clean reshape
    pos = pos_ref[...].reshape(n, 3)
    ids = id_ref[...].reshape(n, 1)
    cats = cat_ref[...].reshape(n, 1)
    wpos = wpos_ref[...]

    # --- nn.Linear(3, d_model/2) on the VPU: 3 broadcast FMAs + bias row. -------
    # wpos rows are already 32-wide (zeros in cols 16:32), so the projection lands
    # in the first half of the output with no concatenate and no K=3 MXU matmul.
    proj = (pos[:, 0:1] * wpos[0:1, :]
            + pos[:, 1:2] * wpos[1:2, :]
            + pos[:, 2:3] * wpos[2:3, :]
            + wpos[3:4, :])                                            # [n, 32]

    # --- id embedding: one compare over 256 lanes, dot into cols 16:24. ---------
    col_i = lax.broadcasted_iota(jnp.int32, (n, N_ID_PAD), 1)
    oh_i = (col_i == ids).astype(jnp.float32)                          # [n, 256]
    emb_i = jnp.dot(oh_i, wid_ref[...],
                    preferred_element_type=jnp.float32,
                    precision=lax.Precision.HIGHEST)                   # [n, 32]

    # --- category embedding: one compare over 64 lanes, dot into cols 24:32. ----
    col_c = lax.broadcasted_iota(jnp.int32, (n, N_CAT_PAD), 1)
    oh_c = (col_c == cats).astype(jnp.float32)                         # [n, 64]
    emb_c = jnp.dot(oh_c, wcat_ref[...],
                    preferred_element_type=jnp.float32,
                    precision=lax.Precision.HIGHEST)                   # [n, 32]

    # --- concat is implicit (disjoint output columns); add positional encoding. --
    dec = (proj + emb_i + emb_c).reshape(b, ts, D_MODEL)
    out_ref[...] = dec + ptab_ref[...][None, :, :]   # dropout = identity (eval mode)


# ---------------------------------------------------------------------------
# Parameter setup (matches the PyTorch module's parameter set).
# ---------------------------------------------------------------------------
def init_params(key):
    k1, k2, k3, k4 = jax.random.split(key, 4)
    return {
        # nn.Linear(3, d_model/2): stored as [in, out] so the math is x @ W + b
        "w_pos": jax.random.normal(k1, (3, D_HALF), jnp.float32) * 0.1,
        "b_pos": jax.random.normal(k2, (1, D_HALF), jnp.float32) * 0.1,
        "id_emb": jax.random.normal(k3, (N_ID, D_QUART), jnp.float32) * 0.1,
        "cat_emb": jax.random.normal(k4, (N_CAT, D_QUART), jnp.float32) * 0.1,
        "pos_table": sinusoid_encoding_table(MAX_SEQ, D_MODEL),        # [2048, 32]
    }


def _build_fused_weights(params):
    # Linear(3 -> 16) weights embedded in 32-wide rows (cols 16:32 zero).
    wpos = jnp.zeros((W_ROWS, D_MODEL), jnp.float32)
    wpos = wpos.at[0:3, 0:D_HALF].set(params["w_pos"])
    wpos = wpos.at[3, 0:D_HALF].set(params["b_pos"][0])
    # id table padded to 256 rows, placed in cols 16:24 (rest zero).
    wid = jnp.zeros((N_ID_PAD, D_MODEL), jnp.float32)
    wid = wid.at[0:N_ID, D_HALF:D_HALF + D_QUART].set(params["id_emb"])
    # category table padded to 64 rows, placed in cols 24:32 (rest zero).
    wcat = jnp.zeros((N_CAT_PAD, D_MODEL), jnp.float32)
    wcat = wcat.at[0:N_CAT, D_HALF + D_QUART:D_MODEL].set(params["cat_emb"])
    return wpos, wid, wcat


def _pick_seq_tile(s_pad, batch, target_tokens=2048):
    """Largest pipeline-legal sequence tile giving ~target_tokens tokens per grid step."""
    max_tile = max(8, (target_tokens // max(batch, 1)) // 8 * 8)
    cands = [t for t in range(8, s_pad + 1, 8) if s_pad % t == 0]     # multiples of 8 dividing s_pad
    good = [t for t in cands if t <= max_tile]
    tile = max(good) if good else min(cands)
    if s_pad // tile < 2:
        # v7x megacore: prefer >=2 "parallel" grid steps when there is enough work per step.
        smaller = [t for t in cands if t < tile and s_pad // t >= 2 and batch * t >= 1024]
        if smaller:
            tile = max(smaller)
    return tile


# ---------------------------------------------------------------------------
# Wrapper: parameter fusion + gridded pallas_call (no token pre-pack).
# ---------------------------------------------------------------------------
def transformer_decoder_forward(params, enc_input, position_sequence, id_sequence,
                                category_sequence, enc_mask, dec_mask=None,
                                local_mask=None, category_mask=None, id_mask=None):
    """Mirrors TransformerDecoder.forward (embedding front-end; eval-mode dropout)."""
    del enc_input, enc_mask, dec_mask, local_mask, category_mask, id_mask  # DecoderLayer-only
    B, S, _ = position_sequence.shape

    # Pad the sequence axis to a sublane multiple so sub-tiles are pipeline-legal.
    s_pad = max(8, ((S + 7) // 8) * 8)
    pad = s_pad - S

    pos = position_sequence.astype(jnp.float32)                       # [B, S, 3]
    ids = id_sequence.astype(jnp.int32)[..., None]                    # [B, S, 1] (free reshape)
    cats = category_sequence.astype(jnp.int32)[..., None]             # [B, S, 1]
    if pad:
        pos = jnp.pad(pos, ((0, 0), (0, pad), (0, 0)))
        ids = jnp.pad(ids, ((0, 0), (0, pad), (0, 0)))
        cats = jnp.pad(cats, ((0, 0), (0, pad), (0, 0)))

    wpos, wid, wcat = _build_fused_weights(params)
    ptab = params["pos_table"][:s_pad, :]                              # [s_pad, 32] — no batch tiling

    tile_s = _pick_seq_tile(s_pad, B)
    n_s = s_pad // tile_s

    out = pl.pallas_call(
        decoder_embed_kernel,
        out_shape=jax.ShapeDtypeStruct((B, s_pad, D_MODEL), jnp.float32),
        grid_spec=pltpu.PrefetchScalarGridSpec(
            num_scalar_prefetch=0,
            grid=(n_s,),                                               # batch folded into the block
            in_specs=[
                pl.BlockSpec((B, tile_s, 3), lambda s: (0, s, 0)),         # positions
                pl.BlockSpec((B, tile_s, 1), lambda s: (0, s, 0)),         # ids
                pl.BlockSpec((B, tile_s, 1), lambda s: (0, s, 0)),         # categories
                pl.BlockSpec((W_ROWS, D_MODEL), lambda s: (0, 0)),         # wpos (resident)
                pl.BlockSpec((N_ID_PAD, D_MODEL), lambda s: (0, 0)),       # wid  (resident)
                pl.BlockSpec((N_CAT_PAD, D_MODEL), lambda s: (0, 0)),      # wcat (resident)
                pl.BlockSpec((tile_s, D_MODEL), lambda s: (s, 0)),         # pos-enc table tile
            ],
            out_specs=pl.BlockSpec((B, tile_s, D_MODEL), lambda s: (0, s, 0)),
        ),
        compiler_params=pltpu.CompilerParams(
            dimension_semantics=("parallel",),       # megacore-shardable on v7x when n_s >= 2
            vmem_limit_bytes=32 * 1024 * 1024,       # safe on v5e/v6e/v7x; ~15 MiB peak at 2048 tok/step
        ),
    )(pos, ids, cats, wpos, wid, wcat, ptab)

    if pad:
        out = out[:, :S, :]

    # TODO(synk): DecoderLayer (self.layer_stack) is not defined in the provided source;
    #             the N_LAYER attention/FFN layers are therefore not applied here.
    return out


# ---------------------------------------------------------------------------
# Pure-JAX reference for verification.
# ---------------------------------------------------------------------------
def reference_forward(params, position_sequence, id_sequence, category_sequence):
    S = position_sequence.shape[1]
    proj = jnp.einsum("bsk,kd->bsd", position_sequence.astype(jnp.float32),
                      params["w_pos"], precision=jax.lax.Precision.HIGHEST)
    proj = proj + params["b_pos"][0]
    id_e = params["id_emb"][id_sequence]
    cat_e = params["cat_emb"][category_sequence]
    dec = jnp.concatenate([proj, id_e, cat_e], axis=-1)
    return dec + params["pos_table"][:S, :][None, :, :]


if __name__ == "__main__":
    key = jax.random.PRNGKey(0)
    pk, k_pos, k_id, k_cat, k_enc = jax.random.split(key, 5)

    B, S = 2, 8
    params = init_params(pk)

    position_sequence = jax.random.normal(k_pos, (B, S, 3), jnp.float32)
    id_sequence = jax.random.randint(k_id, (B, S), 0, N_ID, jnp.int32)
    category_sequence = jax.random.randint(k_cat, (B, S), 0, N_CAT, jnp.int32)
    enc_input = jax.random.normal(k_enc, (B, S, D_MODEL), jnp.float32)  # unused until DecoderLayer
    enc_mask = jnp.ones((B, 1, S), jnp.float32)

    out = transformer_decoder_forward(params, enc_input, position_sequence,
                                      id_sequence, category_sequence, enc_mask)
    out = jax.block_until_ready(out)

    ref = reference_forward(params, position_sequence, id_sequence, category_sequence)
    assert out.shape == (B, S, D_MODEL)
    np.testing.assert_allclose(np.asarray(out), np.asarray(ref), rtol=1e-5, atol=1e-5)

    print("KERNEL_OK")
</pallas_src>

<mosaic_0001>
module attributes {stable_mosaic.version = 11 : i64} {
  func.func @decoder_embed_kernel(%arg0: i32, %arg1: memref<2x8x3xf32, #tpu.memory_space<vmem>>, %arg2: memref<2x8x1xi32, #tpu.memory_space<vmem>>, %arg3: memref<2x8x1xi32, #tpu.memory_space<vmem>>, %arg4: memref<8x32xf32, #tpu.memory_space<vmem>>, %arg5: memref<256x32xf32, #tpu.memory_space<vmem>>, %arg6: memref<64x32xf32, #tpu.memory_space<vmem>>, %arg7: memref<8x32xf32, #tpu.memory_space<vmem>>, %arg8: memref<2x8x32xf32, #tpu.memory_space<vmem>>) attributes {dimension_semantics = [#tpu.dimension_semantics<parallel>], iteration_bounds = array<i64: 1>, scalar_prefetch = 0 : i64, scratch_operands = 0 : i64, tpu.core_type = #tpu.core_type<tc>, window_params = [{transform_indices = @transform_0, window_bounds = array<i64: 2, 8, 3>}, {transform_indices = @transform_1, window_bounds = array<i64: 2, 8, 1>}, {transform_indices = @transform_2, window_bounds = array<i64: 2, 8, 1>}, {pipeline_mode = #tpu.pipeline_mode<synchronous>, transform_indices = @transform_3, window_bounds = array<i64: 8, 32>}, {pipeline_mode = #tpu.pipeline_mode<synchronous>, transform_indices = @transform_4, window_bounds = array<i64: 256, 32>}, {pipeline_mode = #tpu.pipeline_mode<synchronous>, transform_indices = @transform_5, window_bounds = array<i64: 64, 32>}, {transform_indices = @transform_6, window_bounds = array<i64: 8, 32>}, {transform_indices = @transform_7, window_bounds = array<i64: 2, 8, 32>}]} {
    %c0 = arith.constant 0 : index
    %c0_0 = arith.constant 0 : index
    %c0_1 = arith.constant 0 : index
    %0 = vector.load %arg1[%c0, %c0_0, %c0_1] : memref<2x8x3xf32, #tpu.memory_space<vmem>>, vector<2x8x3xf32>
    %1 = vector.shape_cast %0 : vector<2x8x3xf32> to vector<16x3xf32>
    %c0_2 = arith.constant 0 : index
    %c0_3 = arith.constant 0 : index
    %c0_4 = arith.constant 0 : index
    %2 = vector.load %arg2[%c0_2, %c0_3, %c0_4] : memref<2x8x1xi32, #tpu.memory_space<vmem>>, vector<2x8x1xi32>
    %3 = vector.shape_cast %2 : vector<2x8x1xi32> to vector<16x1xi32>
    %c0_5 = arith.constant 0 : index
    %c0_6 = arith.constant 0 : index
    %c0_7 = arith.constant 0 : index
    %4 = vector.load %arg3[%c0_5, %c0_6, %c0_7] : memref<2x8x1xi32, #tpu.memory_space<vmem>>, vector<2x8x1xi32>
    %5 = vector.shape_cast %4 : vector<2x8x1xi32> to vector<16x1xi32>
    %c0_8 = arith.constant 0 : index
    %c0_9 = arith.constant 0 : index
    %6 = vector.load %arg4[%c0_8, %c0_9] : memref<8x32xf32, #tpu.memory_space<vmem>>, vector<8x32xf32>
    %7 = vector.extract_strided_slice %1 {offsets = [0, 0], sizes = [16, 1], strides = [1, 1]} : vector<16x3xf32> to vector<16x1xf32>
    %8 = vector.extract_strided_slice %6 {offsets = [0, 0], sizes = [1, 32], strides = [1, 1]} : vector<8x32xf32> to vector<1x32xf32>
    %9 = vector.broadcast %7 : vector<16x1xf32> to vector<16x32xf32>
    %10 = vector.broadcast %8 : vector<1x32xf32> to vector<16x32xf32>
    %11 = arith.mulf %9, %10 : vector<16x32xf32>
    %12 = vector.extract_strided_slice %1 {offsets = [0, 1], sizes = [16, 1], strides = [1, 1]} : vector<16x3xf32> to vector<16x1xf32>
    %13 = vector.extract_strided_slice %6 {offsets = [1, 0], sizes = [1, 32], strides = [1, 1]} : vector<8x32xf32> to vector<1x32xf32>
    %14 = vector.broadcast %12 : vector<16x1xf32> to vector<16x32xf32>
    %15 = vector.broadcast %13 : vector<1x32xf32> to vector<16x32xf32>
    %16 = arith.mulf %14, %15 : vector<16x32xf32>
    %17 = arith.addf %11, %16 : vector<16x32xf32>
    %18 = vector.extract_strided_slice %1 {offsets = [0, 2], sizes = [16, 1], strides = [1, 1]} : vector<16x3xf32> to vector<16x1xf32>
    %19 = vector.extract_strided_slice %6 {offsets = [2, 0], sizes = [1, 32], strides = [1, 1]} : vector<8x32xf32> to vector<1x32xf32>
    %20 = vector.broadcast %18 : vector<16x1xf32> to vector<16x32xf32>
    %21 = vector.broadcast %19 : vector<1x32xf32> to vector<16x32xf32>
    %22 = arith.mulf %20, %21 : vector<16x32xf32>
    %23 = arith.addf %17, %22 : vector<16x32xf32>
    %24 = vector.extract_strided_slice %6 {offsets = [3, 0], sizes = [1, 32], strides = [1, 1]} : vector<8x32xf32> to vector<1x32xf32>
    %25 = vector.broadcast %24 : vector<1x32xf32> to vector<16x32xf32>
    %26 = arith.addf %23, %25 : vector<16x32xf32>
    %27 = tpu.iota {dimensions = array<i32: 1>} : vector<16x256xi32>
    %28 = vector.broadcast %3 : vector<16x1xi32> to vector<16x256xi32>
    %29 = arith.cmpi eq, %27, %28 : vector<16x256xi32>
    %30 = arith.extui %29 : vector<16x256xi1> to vector<16x256xi32>
    %31 = arith.sitofp %30 : vector<16x256xi32> to vector<16x256xf32>
    %c0_10 = arith.constant 0 : index
    %c0_11 = arith.constant 0 : index
    %32 = vector.load %arg5[%c0_10, %c0_11] : memref<256x32xf32, #tpu.memory_space<vmem>>, vector<256x32xf32>
    %cst = arith.constant dense<0.000000e+00> : vector<16x32xf32>
    %33 = tpu.matmul %31, %32, %cst {dimension_numbers = #tpu.dot_dimension_numbers<[1], [0], [0], [1], [0, 0, 1, 1], [], []>, precision = #tpu.contract_precision<fp32>} : vector<16x256xf32>, vector<256x32xf32>, vector<16x32xf32> -> vector<16x32xf32>
    %34 = tpu.iota {dimensions = array<i32: 1>} : vector<16x64xi32>
    %35 = vector.broadcast %5 : vector<16x1xi32> to vector<16x64xi32>
    %36 = arith.cmpi eq, %34, %35 : vector<16x64xi32>
    %37 = arith.extui %36 : vector<16x64xi1> to vector<16x64xi32>
    %38 = arith.sitofp %37 : vector<16x64xi32> to vector<16x64xf32>
    %c0_12 = arith.constant 0 : index
    %c0_13 = arith.constant 0 : index
    %39 = vector.load %arg6[%c0_12, %c0_13] : memref<64x32xf32, #tpu.memory_space<vmem>>, vector<64x32xf32>
    %cst_14 = arith.constant dense<0.000000e+00> : vector<16x32xf32>
    %40 = tpu.matmul %38, %39, %cst_14 {dimension_numbers = #tpu.dot_dimension_numbers<[1], [0], [0], [1], [0, 0, 1, 1], [], []>, precision = #tpu.contract_precision<fp32>} : vector<16x64xf32>, vector<64x32xf32>, vector<16x32xf32> -> vector<16x32xf32>
    %41 = arith.addf %26, %33 : vector<16x32xf32>
    %42 = arith.addf %41, %40 : vector<16x32xf32>
    %43 = vector.shape_cast %42 : vector<16x32xf32> to vector<2x8x32xf32>
    %c0_15 = arith.constant 0 : index
    %c0_16 = arith.constant 0 : index
    %44 = vector.load %arg7[%c0_15, %c0_16] : memref<8x32xf32, #tpu.memory_space<vmem>>, vector<8x32xf32>
    %45 = vector.shape_cast %44 : vector<8x32xf32> to vector<1x8x32xf32>
    %46 = vector.broadcast %45 : vector<1x8x32xf32> to vector<2x8x32xf32>
    %47 = arith.addf %43, %46 : vector<2x8x32xf32>
    %c0_17 = arith.constant 0 : index
    %c0_18 = arith.constant 0 : index
    %c0_19 = arith.constant 0 : index
    %48 = vector.load %arg8[%c0_17, %c0_18, %c0_19] : memref<2x8x32xf32, #tpu.memory_space<vmem>>, vector<2x8x32xf32>
    tpu.vector_store %arg8[%c0_17, %c0_18, %c0_19], %47 {strides = array<i32>} : memref<2x8x32xf32, #tpu.memory_space<vmem>>, vector<2x8x32xf32>,
    return
  }
  func.func @transform_0(%arg0: i32) -> (i32, i32, i32) {
    %c0_i32 = arith.constant 0 : i32
    %c0_i32_0 = arith.constant 0 : i32
    %c0_i32_1 = arith.constant 0 : i32
    return %c0_i32, %arg0, %c0_i32_0 : i32, i32, i32
  }
  func.func @transform_1(%arg0: i32) -> (i32, i32, i32) {
    %c0_i32 = arith.constant 0 : i32
    %c0_i32_0 = arith.constant 0 : i32
    %c0_i32_1 = arith.constant 0 : i32
    return %c0_i32, %arg0, %c0_i32_0 : i32, i32, i32
  }
  func.func @transform_2(%arg0: i32) -> (i32, i32, i32) {
    %c0_i32 = arith.constant 0 : i32
    %c0_i32_0 = arith.constant 0 : i32
    %c0_i32_1 = arith.constant 0 : i32
    return %c0_i32, %arg0, %c0_i32_0 : i32, i32, i32
  }
  func.func @transform_3(%arg0: i32) -> (i32, i32) {
    %c0_i32 = arith.constant 0 : i32
    %c0_i32_0 = arith.constant 0 : i32
    %c0_i32_1 = arith.constant 0 : i32
    return %c0_i32, %c0_i32_0 : i32, i32
  }
  func.func @transform_4(%arg0: i32) -> (i32, i32) {
    %c0_i32 = arith.constant 0 : i32
    %c0_i32_0 = arith.constant 0 : i32
    %c0_i32_1 = arith.constant 0 : i32
    return %c0_i32, %c0_i32_0 : i32, i32
  }
  func.func @transform_5(%arg0: i32) -> (i32, i32) {
    %c0_i32 = arith.constant 0 : i32
    %c0_i32_0 = arith.constant 0 : i32
    %c0_i32_1 = arith.constant 0 : i32
    return %c0_i32, %c0_i32_0 : i32, i32
  }
  func.func @transform_6(%arg0: i32) -> (i32, i32) {
    %c0_i32 = arith.constant 0 : i32
    %c0_i32_0 = arith.constant 0 : i32
    return %arg0, %c0_i32 : i32, i32
  }
  func.func @transform_7(%arg0: i32) -> (i32, i32, i32) {
    %c0_i32 = arith.constant 0 : i32
    %c0_i32_0 = arith.constant 0 : i32
    %c0_i32_1 = arith.constant 0 : i32
    return %c0_i32, %arg0, %c0_i32_0 : i32, i32, i32
  }
}

</mosaic_0001>

<llo_original>
// kernel: tpu_custom_call.1
$region0: #{tpu_custom_call.1}
  #allocation0 [shape = 'u32[]', space=smem, size = 0x4, offset = 0x4, fixed_abs, tag = 'smem constant byte address 0x4 - core index']
  #allocation1 [shape = 'u32[144,128]{1,0:T(1,128)}', space=vmem, size = 0x12000, scoped, tag = 'internal scratch']
  %s0 = inlined_call_operand.vmem [shape: f32[2,8,3], index: 0, kind: input, shape index: {}]
  %s1 = inlined_call_operand.vmem [shape: s32[2,8,1], index: 1, kind: input, shape index: {}]
  %s2 = inlined_call_operand.vmem [shape: s32[2,8,1], index: 2, kind: input, shape index: {}]
  %s3 = inlined_call_operand.vmem [shape: f32[8,32], index: 3, kind: input, shape index: {}]
  %s4 = inlined_call_operand.vmem [shape: f32[256,32], index: 4, kind: input, shape index: {}]
  %s5 = inlined_call_operand.vmem [shape: f32[64,32], index: 5, kind: input, shape index: {}]
  %s6 = inlined_call_operand.vmem [shape: f32[8,32], index: 6, kind: input, shape index: {}]
  %s7 = inlined_call_operand.hbm [shape: f32[2,8,32], index: 7, kind: output, shape index: {}]
  %s8 = sld [smem:[#allocation0]]
  $region38: #{tpu_custom_call.1} parent=0
    _
  %s10 = ssub.s32 1, %s8
  %s11 = scalar_select 0, %s10, %s8
  $region1: #{tpu_custom_call.1} parent=0
    #allocation2 [shape = 'u8[8192]{0}', space=vmem, size = 0x2000, scoped, tag = 'output window, operand 0, single buffered']
    #allocation3 [shape = 's32[1]{0}', space=sflag, size = 0x4, scoped, tag = 'scoped memory for tpu_custom_call.1']
    %12 = vsyncpa [#allocation3], 0
    // Predicated region
    $region2: #{tpu_custom_call.1} parent=1 // pred_check
      _
    $region3: #{tpu_custom_call.1} parent=1 // pred_check_branch
      %14 = sbr.rel (0) target = $region5
    $region4: #{tpu_custom_call.1} parent=1 // pred_region
      _
    $region5: #{tpu_custom_call.1} parent=1 // pred_fallthru
      _
    // Predicated region
    $region6: #{tpu_custom_call.1} parent=1 // pred_check
      _
    $region7: #{tpu_custom_call.1} parent=1 // pred_check_branch
      %16 = sbr.rel (0) target = $region9
    $region8: #{tpu_custom_call.1} parent=1 // pred_region
      _
    $region9: #{tpu_custom_call.1} parent=1 // pred_fallthru
      _
    // Predicated region
    $region10: #{tpu_custom_call.1} parent=1 // pred_check
      _
    $region11: #{tpu_custom_call.1} parent=1 // pred_check_branch
      %18 = sbr.rel (0) target = $region13
    $region12: #{tpu_custom_call.1} parent=1 // pred_region
      _
    $region13: #{tpu_custom_call.1} parent=1 // pred_fallthru
      _
    // Predicated region
    $region14: #{tpu_custom_call.1} parent=1 // pred_check
      _
    $region15: #{tpu_custom_call.1} parent=1 // pred_check_branch
      %20 = sbr.rel (0) target = $region17
    $region16: #{tpu_custom_call.1} parent=1 // pred_region
      _
    $region17: #{tpu_custom_call.1} parent=1 // pred_fallthru
      _
    // Predicated region
    $region18: #{tpu_custom_call.1} parent=1 // pred_check
      _
    $region19: #{tpu_custom_call.1} parent=1 // pred_check_branch
      %22 = sbr.rel (0) target = $region21
    $region20: #{tpu_custom_call.1} parent=1 // pred_region
      _
    $region21: #{tpu_custom_call.1} parent=1 // pred_fallthru
      _
    // Predicated region
    $region22: #{tpu_custom_call.1} parent=1 // pred_check
      _
    $region23: #{tpu_custom_call.1} parent=1 // pred_check_branch
      %24 = sbr.rel (0) target = $region25
    $region24: #{tpu_custom_call.1} parent=1 // pred_region
      _
    $region25: #{tpu_custom_call.1} parent=1 // pred_fallthru
      _
    // Predicated region
    $region26: #{tpu_custom_call.1} parent=1 // pred_check
      _
    $region27: #{tpu_custom_call.1} parent=1 // pred_check_branch
      %26 = sbr.rel (0) target = $region29
    $region28: #{tpu_custom_call.1} parent=1 // pred_region
      _
    $region29: #{tpu_custom_call.1} parent=1 // pred_fallthru
      _
    %v27 = vld [vmem:[%s0] sm:$0xff]
    %v28 = vld [vmem:[%s0 + $0x8] sm:$0xff]
    %v29 = vld [vmem:[%s1] sm:$0xff]
    %v30 = vld [vmem:[%s1 + $0x8] sm:$0xff]
    %v31 = vld [vmem:[%s2] sm:$0xff]
    %v32 = vld [vmem:[%s2 + $0x8] sm:$0xff]
    %v33 = vld [vmem:[%s3] sm:$0xff]
    %35 = vset.pattern.permute.xlu0 0
    %36 = vperm.xlu0 %35, %v27
    %v37 = vpop.permute.xlu0 %36
    %40 = vset.pattern.permute.xlu0 0
    %41 = vperm.xlu0 %40, %v28
    %v42 = vpop.permute.xlu0 %41
    %v44 = vlaneseq
    %v45 = vshrl.u32 %v44, 7
    %v46 = vsub.s32 0, %v45
    %v47 = vrot.slane %v33, %v46
    %v48 = vmul.f32 %v37, %v47
    %v49 = vmul.f32 %v42, %v47
    %50 = vset.pattern.permute.xlu0 1
    %51 = vperm.xlu0 %50, %v27
    %v52 = vpop.permute.xlu0 %51
    %54 = vset.pattern.permute.xlu0 1
    %55 = vperm.xlu0 %54, %v28
    %v56 = vpop.permute.xlu0 %55
    %v58 = vlaneseq
    %v59 = vshrl.u32 %v58, 7
    %v60 = vsub.s32 1, %v59
    %v61 = vrot.slane %v33, %v60
    %v62 = vmul.f32 %v52, %v61
    %v63 = vmul.f32 %v56, %v61
    %v64 = vadd.f32 %v48, %v62
    %v65 = vadd.f32 %v49, %v63
    %66 = vset.pattern.permute.xlu0 2
    %67 = vperm.xlu0 %66, %v27
    %v68 = vpop.permute.xlu0 %67
    %70 = vset.pattern.permute.xlu0 2
    %71 = vperm.xlu0 %70, %v28
    %v72 = vpop.permute.xlu0 %71
    %v74 = vlaneseq
    %v75 = vshrl.u32 %v74, 7
    %v76 = vsub.s32 2, %v75
    %v77 = vrot.slane %v33, %v76
    %v78 = vmul.f32 %v68, %v77
    %v79 = vmul.f32 %v72, %v77
    %v80 = vadd.f32 %v64, %v78
    %v81 = vadd.f32 %v65, %v79
    %v82 = vlaneseq
    %v83 = vshrl.u32 %v82, 7
    %v84 = vsub.s32 3, %v83
    %v85 = vrot.slane %v33, %v84
    %v86 = vadd.f32 %v80, %v85
    %v87 = vadd.f32 %v81, %v85
    %v88 = vlaneseq
    %v89 = vand.u32 %v88, 127
    %v90 = vadd.s32 %v89, 128
    %91 = vset.pattern.permute.xlu0 0
    %92 = vperm.xlu0 %91, %v29
    %v93 = vpop.permute.xlu0 %92
    %94 = vset.pattern.permute.xlu0 0
    %95 = vperm.xlu0 %94, %v30
    %v96 = vpop.permute.xlu0 %95
    %vm97 = vcmp.eq.s32.totalorder %v89, %v93
    %vm98 = vcmp.eq.s32.totalorder %v90, %v93
    %vm99 = vcmp.eq.s32.totalorder %v89, %v96
    %vm100 = vcmp.eq.s32.totalorder %v90, %v96
    %v101 = vsel %vm97, 1, 0
    %v102 = vsel %vm98, 1, 0
    %v103 = vsel %vm99, 1, 0
    %v104 = vsel %vm100, 1, 0
    %v105 = vcvt.s32.f32 %v101
    %v106 = vcvt.s32.f32 %v102
    %v107 = vcvt.s32.f32 %v103
    %v108 = vcvt.s32.f32 %v104
    %v109 = vld [vmem:[%s4] sm:$0xff]
    %v110 = vld [vmem:[%s4 + $0x8] sm:$0xff]
    %v111 = vld [vmem:[%s4 + $0x10] sm:$0xff]
    %v112 = vld [vmem:[%s4 + $0x18] sm:$0xff]
    %v113 = vld [vmem:[%s4 + $0x20] sm:$0xff]
    %v114 = vld [vmem:[%s4 + $0x28] sm:$0xff]
    %v115 = vld [vmem:[%s4 + $0x30] sm:$0xff]
    %v116 = vld [vmem:[%s4 + $0x38] sm:$0xff]
    %v117 = vld [vmem:[%s4 + $0x40] sm:$0xff]
    %v118 = vld [vmem:[%s4 + $0x48] sm:$0xff]
    %v119 = vld [vmem:[%s4 + $0x50] sm:$0xff]
    %v120 = vld [vmem:[%s4 + $0x58] sm:$0xff]
    %v121 = vld [vmem:[%s4 + $0x60] sm:$0xff]
    %v122 = vld [vmem:[%s4 + $0x68] sm:$0xff]
    %v123 = vld [vmem:[%s4 + $0x70] sm:$0xff]
    %v124 = vld [vmem:[%s4 + $0x78] sm:$0xff]
    %v125 = vld [vmem:[%s4 + $0x80] sm:$0xff]
    %v126 = vld [vmem:[%s4 + $0x88] sm:$0xff]
    %v127 = vld [vmem:[%s4 + $0x90] sm:$0xff]
    %v128 = vld [vmem:[%s4 + $0x98] sm:$0xff]
    %v129 = vld [vmem:[%s4 + $0xa0] sm:$0xff]
    %v130 = vld [vmem:[%s4 + $0xa8] sm:$0xff]
    %v131 = vld [vmem:[%s4 + $0xb0] sm:$0xff]
    %v132 = vld [vmem:[%s4 + $0xb8] sm:$0xff]
    %v133 = vld [vmem:[%s4 + $0xc0] sm:$0xff]
    %v134 = vld [vmem:[%s4 + $0xc8] sm:$0xff]
    %v135 = vld [vmem:[%s4 + $0xd0] sm:$0xff]
    %v136 = vld [vmem:[%s4 + $0xd8] sm:$0xff]
    %v137 = vld [vmem:[%s4 + $0xe0] sm:$0xff]
    %v138 = vld [vmem:[%s4 + $0xe8] sm:$0xff]
    %v139 = vld [vmem:[%s4 + $0xf0] sm:$0xff]
    %v140 = vld [vmem:[%s4 + $0xf8] sm:$0xff]
    %141 = vmatprep.subr.mxu0 0.0
    %v142 = vand.u32 %v124, 4294901760
    %143 = vmatpush1.msra.mxu0 %v142
    %144 = vmatprep.subr.mxu0 0.0
    %v145 = vand.u32 %v123, 4294901760
    %146 = vmatpush1.msra.mxu0 %v145
    %147 = vmatprep.subr.mxu0 0.0
    %v148 = vand.u32 %v122, 4294901760
    %149 = vmatpush1.msra.mxu0 %v148
    %150 = vmatprep.subr.mxu0 0.0
    %v151 = vand.u32 %v121, 4294901760
    %152 = vmatpush1.msra.mxu0 %v151
    %153 = vmatprep.subr.mxu0 0.0
    %v154 = vand.u32 %v120, 4294901760
    %155 = vmatpush1.msra.mxu0 %v154
    %156 = vmatprep.subr.mxu0 0.0
    %v157 = vand.u32 %v119, 4294901760
    %158 = vmatpush1.msra.mxu0 %v157
    %159 = vmatprep.subr.mxu0 0.0
    %v160 = vand.u32 %v118, 4294901760
    %161 = vmatpush1.msra.mxu0 %v160
    %162 = vmatprep.subr.mxu0 0.0
    %v163 = vand.u32 %v117, 4294901760
    %164 = vmatpush1.msra.mxu0 %v163
    %165 = vmatprep.subr.mxu0 0.0
    %v166 = vand.u32 %v116, 4294901760
    %167 = vmatpush1.msra.mxu0 %v166
    %168 = vmatprep.subr.mxu0 0.0
    %v169 = vand.u32 %v115, 4294901760
    %170 = vmatpush1.msra.mxu0 %v169
    %171 = vmatprep.subr.mxu0 0.0
    %v172 = vand.u32 %v114, 4294901760
    %173 = vmatpush1.msra.mxu0 %v172
    %174 = vmatprep.subr.mxu0 0.0
    %v175 = vand.u32 %v113, 4294901760
    %176 = vmatpush1.msra.mxu0 %v175
    %177 = vmatprep.subr.mxu0 0.0
    %v178 = vand.u32 %v112, 4294901760
    %179 = vmatpush1.msra.mxu0 %v178
    %180 = vmatprep.subr.mxu0 0.0
    %v181 = vand.u32 %v111, 4294901760
    %182 = vmatpush1.msra.mxu0 %v181
    %183 = vmatprep.subr.mxu0 0.0
    %v184 = vand.u32 %v110, 4294901760
    %185 = vmatpush1.msra.mxu0 %v184
    %186 = vmatprep.subr.mxu0 0.0
    %v187 = vand.u32 %v109, 4294901760
    %188 = vmatpush1.msra.mxu0 %v187
    %189 = vmatprep.subr.mxu0 0.0
    %v190 = vand.u32 %v140, 4294901760
    %191 = vmatpush2.msra.mxu0 %v190
    %192 = vmatprep.subr.mxu0 0.0
    %v193 = vand.u32 %v139, 4294901760
    %194 = vmatpush2.msra.mxu0 %v193
    %195 = vmatprep.subr.mxu0 0.0
    %v196 = vand.u32 %v138, 4294901760
    %197 = vmatpush2.msra.mxu0 %v196
    %198 = vmatprep.subr.mxu0 0.0
    %v199 = vand.u32 %v137, 4294901760
    %200 = vmatpush2.msra.mxu0 %v199
    %201 = vmatprep.subr.mxu0 0.0
    %v202 = vand.u32 %v136, 4294901760
    %203 = vmatpush2.msra.mxu0 %v202
    %204 = vmatprep.subr.mxu0 0.0
    %v205 = vand.u32 %v135, 4294901760
    %206 = vmatpush2.msra.mxu0 %v205
    %207 = vmatprep.subr.mxu0 0.0
    %v208 = vand.u32 %v134, 4294901760
    %209 = vmatpush2.msra.mxu0 %v208
    %210 = vmatprep.subr.mxu0 0.0
    %v211 = vand.u32 %v133, 4294901760
    %212 = vmatpush2.msra.mxu0 %v211
    %213 = vmatprep.subr.mxu0 0.0
    %v214 = vand.u32 %v132, 4294901760
    %215 = vmatpush2.msra.mxu0 %v214
    %216 = vmatprep.subr.mxu0 0.0
    %v217 = vand.u32 %v131, 4294901760
    %218 = vmatpush2.msra.mxu0 %v217
    %219 = vmatprep.subr.mxu0 0.0
    %v220 = vand.u32 %v130, 4294901760
    %221 = vmatpush2.msra.mxu0 %v220
    %222 = vmatprep.subr.mxu0 0.0
    %v223 = vand.u32 %v129, 4294901760
    %224 = vmatpush2.msra.mxu0 %v223
    %225 = vmatprep.subr.mxu0 0.0
    %v226 = vand.u32 %v128, 4294901760
    %227 = vmatpush2.msra.mxu0 %v226
    %228 = vmatprep.subr.mxu0 0.0
    %v229 = vand.u32 %v127, 4294901760
    %230 = vmatpush2.msra.mxu0 %v229
    %231 = vmatprep.subr.mxu0 0.0
    %v232 = vand.u32 %v126, 4294901760
    %233 = vmatpush2.msra.mxu0 %v232
    %234 = vmatprep.subr.mxu0 0.0
    %v235 = vand.u32 %v125, 4294901760
    %236 = vmatpush2.msra.mxu0 %v235
    %v237 = vand.u32 %v106, 4294901760
    %v238 = vsub.f32 %v106, %v237
    %v239 = vand.u32 %v238, 4294901760
    %v240 = vsub.f32 %v238, %v239
    %v241 = vand.u32 %v240, 4294901760
    %242 = vmatprep.mubr.f32.mxu0 %v241
    %v243 = vand.u32 %v105, 4294901760
    %v244 = vsub.f32 %v105, %v243
    %v245 = vand.u32 %v244, 4294901760
    %v246 = vsub.f32 %v244, %v245
    %v247 = vand.u32 %v246, 4294901760
    %248 = vmatmul.mubr.f32.gmra.mxu0 %v247
    %v249 = vpop.f32.mrf.mxu0
    %v250 = vadd.f32 0.0, %v249
    %v251 = vpop.f32.mrf.mxu0
    %v252 = vand.u32 %v108, 4294901760
    %v253 = vsub.f32 %v108, %v252
    %v254 = vand.u32 %v253, 4294901760
    %v255 = vsub.f32 %v253, %v254
    %v256 = vand.u32 %v255, 4294901760
    %257 = vmatprep.mubr.f32.mxu0 %v256
    %v258 = vand.u32 %v107, 4294901760
    %v259 = vsub.f32 %v107, %v258
    %v260 = vand.u32 %v259, 4294901760
    %v261 = vsub.f32 %v259, %v260
    %v262 = vand.u32 %v261, 4294901760
    %263 = vmatmul.mubr.f32.gmra.mxu0 %v262
    %v264 = vpop.f32.mrf.mxu0
    %v265 = vadd.f32 0.0, %v264
    %v266 = vpop.f32.mrf.mxu0
    %267 = vdwg.mxu0
    %268 = vmatprep.subr.mxu0 0.0
    %v269 = vand.u32 %v124, 4294901760
    %v270 = vsub.f32 %v124, %v269
    %v271 = vand.u32 %v270, 4294901760
    %v272 = vsub.f32 %v270, %v271
    %v273 = vand.u32 %v272, 4294901760
    %274 = vmatpush1.msra.mxu0 %v273
    %275 = vmatprep.subr.mxu0 0.0
    %v276 = vand.u32 %v123, 4294901760
    %v277 = vsub.f32 %v123, %v276
    %v278 = vand.u32 %v277, 4294901760
    %v279 = vsub.f32 %v277, %v278
    %v280 = vand.u32 %v279, 4294901760
    %281 = vmatpush1.msra.mxu0 %v280
    %282 = vmatprep.subr.mxu0 0.0
    %v283 = vand.u32 %v122, 4294901760
    %v284 = vsub.f32 %v122, %v283
    %v285 = vand.u32 %v284, 4294901760
    %v286 = vsub.f32 %v284, %v285
    %v287 = vand.u32 %v286, 4294901760
    %288 = vmatpush1.msra.mxu0 %v287
    %289 = vmatprep.subr.mxu0 0.0
    %v290 = vand.u32 %v121, 4294901760
    %v291 = vsub.f32 %v121, %v290
    %v292 = vand.u32 %v291, 4294901760
    %v293 = vsub.f32 %v291, %v292
    %v294 = vand.u32 %v293, 4294901760
    %295 = vmatpush1.msra.mxu0 %v294
    %296 = vmatprep.subr.mxu0 0.0
    %v297 = vand.u32 %v120, 4294901760
    %v298 = vsub.f32 %v120, %v297
    %v299 = vand.u32 %v298, 4294901760
    %v300 = vsub.f32 %v298, %v299
    %v301 = vand.u32 %v300, 4294901760
    %302 = vmatpush1.msra.mxu0 %v301
    %303 = vmatprep.subr.mxu0 0.0
    %v304 = vand.u32 %v119, 4294901760
    %v305 = vsub.f32 %v119, %v304
    %v306 = vand.u32 %v305, 4294901760
    %v307 = vsub.f32 %v305, %v306
    %v308 = vand.u32 %v307, 4294901760
    %309 = vmatpush1.msra.mxu0 %v308
    %310 = vmatprep.subr.mxu0 0.0
    %v311 = vand.u32 %v118, 4294901760
    %v312 = vsub.f32 %v118, %v311
    %v313 = vand.u32 %v312, 4294901760
    %v314 = vsub.f32 %v312, %v313
    %v315 = vand.u32 %v314, 4294901760
    %316 = vmatpush1.msra.mxu0 %v315
    %317 = vmatprep.subr.mxu0 0.0
    %v318 = vand.u32 %v117, 4294901760
    %v319 = vsub.f32 %v117, %v318
    %v320 = vand.u32 %v319, 4294901760
    %v321 = vsub.f32 %v319, %v320
    %v322 = vand.u32 %v321, 4294901760
    %323 = vmatpush1.msra.mxu0 %v322
    %324 = vmatprep.subr.mxu0 0.0
    %v325 = vand.u32 %v116, 4294901760
    %v326 = vsub.f32 %v116, %v325
    %v327 = vand.u32 %v326, 4294901760
    %v328 = vsub.f32 %v326, %v327
    %v329 = vand.u32 %v328, 4294901760
    %330 = vmatpush1.msra.mxu0 %v329
    %331 = vmatprep.subr.mxu0 0.0
    %v332 = vand.u32 %v115, 4294901760
    %v333 = vsub.f32 %v115, %v332
    %v334 = vand.u32 %v333, 4294901760
    %v335 = vsub.f32 %v333, %v334
    %v336 = vand.u32 %v335, 4294901760
    %337 = vmatpush1.msra.mxu0 %v336
    %338 = vmatprep.subr.mxu0 0.0
    %v339 = vand.u32 %v114, 4294901760
    %v340 = vsub.f32 %v114, %v339
    %v341 = vand.u32 %v340, 4294901760
    %v342 = vsub.f32 %v340, %v341
    %v343 = vand.u32 %v342, 4294901760
    %344 = vmatpush1.msra.mxu0 %v343
    %345 = vmatprep.subr.mxu0 0.0
    %v346 = vand.u32 %v113, 4294901760
    %v347 = vsub.f32 %v113, %v346
    %v348 = vand.u32 %v347, 4294901760
    %v349 = vsub.f32 %v347, %v348
    %v350 = vand.u32 %v349, 4294901760
    %351 = vmatpush1.msra.mxu0 %v350
    %352 = vmatprep.subr.mxu0 0.0
    %v353 = vand.u32 %v112, 4294901760
    %v354 = vsub.f32 %v112, %v353
    %v355 = vand.u32 %v354, 4294901760
    %v356 = vsub.f32 %v354, %v355
    %v357 = vand.u32 %v356, 4294901760
    %358 = vmatpush1.msra.mxu0 %v357
    %359 = vmatprep.subr.mxu0 0.0
    %v360 = vand.u32 %v111, 4294901760
    %v361 = vsub.f32 %v111, %v360
    %v362 = vand.u32 %v361, 4294901760
    %v363 = vsub.f32 %v361, %v362
    %v364 = vand.u32 %v363, 4294901760
    %365 = vmatpush1.msra.mxu0 %v364
    %366 = vmatprep.subr.mxu0 0.0
    %v367 = vand.u32 %v110, 4294901760
    %v368 = vsub.f32 %v110, %v367
    %v369 = vand.u32 %v368, 4294901760
    %v370 = vsub.f32 %v368, %v369
    %v371 = vand.u32 %v370, 4294901760
    %372 = vmatpush1.msra.mxu0 %v371
    %373 = vmatprep.subr.mxu0 0.0
    %v374 = vand.u32 %v109, 4294901760
    %v375 = vsub.f32 %v109, %v374
    %v376 = vand.u32 %v375, 4294901760
    %v377 = vsub.f32 %v375, %v376
    %v378 = vand.u32 %v377, 4294901760
    %379 = vmatpush1.msra.mxu0 %v378
    %380 = vmatprep.subr.mxu0 0.0
    %v381 = vand.u32 %v140, 4294901760
    %v382 = vsub.f32 %v140, %v381
    %v383 = vand.u32 %v382, 4294901760
    %v384 = vsub.f32 %v382, %v383
    %v385 = vand.u32 %v384, 4294901760
    %386 = vmatpush2.msra.mxu0 %v385
    %387 = vmatprep.subr.mxu0 0.0
    %v388 = vand.u32 %v139, 4294901760
    %v389 = vsub.f32 %v139, %v388
    %v390 = vand.u32 %v389, 4294901760
    %v391 = vsub.f32 %v389, %v390
    %v392 = vand.u32 %v391, 4294901760
    %393 = vmatpush2.msra.mxu0 %v392
    %394 = vmatprep.subr.mxu0 0.0
    %v395 = vand.u32 %v138, 4294901760
    %v396 = vsub.f32 %v138, %v395
    %v397 = vand.u32 %v396, 4294901760
    %v398 = vsub.f32 %v396, %v397
    %v399 = vand.u32 %v398, 4294901760
    %400 = vmatpush2.msra.mxu0 %v399
    %401 = vmatprep.subr.mxu0 0.0
    %v402 = vand.u32 %v137, 4294901760
    %v403 = vsub.f32 %v137, %v402
    %v404 = vand.u32 %v403, 4294901760
    %v405 = vsub.f32 %v403, %v404
    %v406 = vand.u32 %v405, 4294901760
    %407 = vmatpush2.msra.mxu0 %v406
    %408 = vmatprep.subr.mxu0 0.0
    %v409 = vand.u32 %v136, 4294901760
    %v410 = vsub.f32 %v136, %v409
    %v411 = vand.u32 %v410, 4294901760
    %v412 = vsub.f32 %v410, %v411
    %v413 = vand.u32 %v412, 4294901760
    %414 = vmatpush2.msra.mxu0 %v413
    %415 = vmatprep.subr.mxu0 0.0
    %v416 = vand.u32 %v135, 4294901760
    %v417 = vsub.f32 %v135, %v416
    %v418 = vand.u32 %v417, 4294901760
    %v419 = vsub.f32 %v417, %v418
    %v420 = vand.u32 %v419, 4294901760
    %421 = vmatpush2.msra.mxu0 %v420
    %422 = vmatprep.subr.mxu0 0.0
    %v423 = vand.u32 %v134, 4294901760
    %v424 = vsub.f32 %v134, %v423
    %v425 = vand.u32 %v424, 4294901760
    %v426 = vsub.f32 %v424, %v425
    %v427 = vand.u32 %v426, 4294901760
    %428 = vmatpush2.msra.mxu0 %v427
    %429 = vmatprep.subr.mxu0 0.0
    %v430 = vand.u32 %v133, 4294901760
    %v431 = vsub.f32 %v133, %v430
    %v432 = vand.u32 %v431, 4294901760
    %v433 = vsub.f32 %v431, %v432
    %v434 = vand.u32 %v433, 4294901760
    %435 = vmatpush2.msra.mxu0 %v434
    %436 = vmatprep.subr.mxu0 0.0
    %v437 = vand.u32 %v132, 4294901760
    %v438 = vsub.f32 %v132, %v437
    %v439 = vand.u32 %v438, 4294901760
    %v440 = vsub.f32 %v438, %v439
    %v441 = vand.u32 %v440, 4294901760
    %442 = vmatpush2.msra.mxu0 %v441
    %443 = vmatprep.subr.mxu0 0.0
    %v444 = vand.u32 %v131, 4294901760
    %v445 = vsub.f32 %v131, %v444
    %v446 = vand.u32 %v445, 4294901760
    %v447 = vsub.f32 %v445, %v446
    %v448 = vand.u32 %v447, 4294901760
    %449 = vmatpush2.msra.mxu0 %v448
    %450 = vmatprep.subr.mxu0 0.0
    %v451 = vand.u32 %v130, 4294901760
    %v452 = vsub.f32 %v130, %v451
    %v453 = vand.u32 %v452, 4294901760
    %v454 = vsub.f32 %v452, %v453
    %v455 = vand.u32 %v454, 4294901760
    %456 = vmatpush2.msra.mxu0 %v455
    %457 = vmatprep.subr.mxu0 0.0
    %v458 = vand.u32 %v129, 4294901760
    %v459 = vsub.f32 %v129, %v458
    %v460 = vand.u32 %v459, 4294901760
    %v461 = vsub.f32 %v459, %v460
    %v462 = vand.u32 %v461, 4294901760
    %463 = vmatpush2.msra.mxu0 %v462
    %464 = vmatprep.subr.mxu0 0.0
    %v465 = vand.u32 %v128, 4294901760
    %v466 = vsub.f32 %v128, %v465
    %v467 = vand.u32 %v466, 4294901760
    %v468 = vsub.f32 %v466, %v467
    %v469 = vand.u32 %v468, 4294901760
    %470 = vmatpush2.msra.mxu0 %v469
    %471 = vmatprep.subr.mxu0 0.0
    %v472 = vand.u32 %v127, 4294901760
    %v473 = vsub.f32 %v127, %v472
    %v474 = vand.u32 %v473, 4294901760
    %v475 = vsub.f32 %v473, %v474
    %v476 = vand.u32 %v475, 4294901760
    %477 = vmatpush2.msra.mxu0 %v476
    %478 = vmatprep.subr.mxu0 0.0
    %v479 = vand.u32 %v126, 4294901760
    %v480 = vsub.f32 %v126, %v479
    %v481 = vand.u32 %v480, 4294901760
    %v482 = vsub.f32 %v480, %v481
    %v483 = vand.u32 %v482, 4294901760
    %484 = vmatpush2.msra.mxu0 %v483
    %485 = vmatprep.subr.mxu0 0.0
    %v486 = vand.u32 %v125, 4294901760
    %v487 = vsub.f32 %v125, %v486
    %v488 = vand.u32 %v487, 4294901760
    %v489 = vsub.f32 %v487, %v488
    %v490 = vand.u32 %v489, 4294901760
    %491 = vmatpush2.msra.mxu0 %v490
    %v492 = vand.u32 %v106, 4294901760
    %493 = vmatprep.mubr.f32.mxu0 %v492
    %v494 = vand.u32 %v105, 4294901760
    %495 = vmatmul.mubr.f32.gmra.mxu0 %v494
    %v496 = vpop.f32.mrf.mxu0
    %v497 = vadd.f32 %v250, %v496
    %v498 = vpop.f32.mrf.mxu0
    %v499 = vand.u32 %v108, 4294901760
    %500 = vmatprep.mubr.f32.mxu0 %v499
    %v501 = vand.u32 %v107, 4294901760
    %502 = vmatmul.mubr.f32.gmra.mxu0 %v501
    %v503 = vpop.f32.mrf.mxu0
    %v504 = vadd.f32 %v265, %v503
    %v505 = vpop.f32.mrf.mxu0
    %506 = vdwg.mxu0
    %507 = vmatprep.subr.mxu0 0.0
    %v508 = vand.u32 %v124, 4294901760
    %v509 = vsub.f32 %v124, %v508
    %510 = vmatpush1.msra.mxu0 %v509
    %511 = vmatprep.subr.mxu0 0.0
    %v512 = vand.u32 %v123, 4294901760
    %v513 = vsub.f32 %v123, %v512
    %514 = vmatpush1.msra.mxu0 %v513
    %515 = vmatprep.subr.mxu0 0.0
    %v516 = vand.u32 %v122, 4294901760
    %v517 = vsub.f32 %v122, %v516
    %518 = vmatpush1.msra.mxu0 %v517
    %519 = vmatprep.subr.mxu0 0.0
    %v520 = vand.u32 %v121, 4294901760
    %v521 = vsub.f32 %v121, %v520
    %522 = vmatpush1.msra.mxu0 %v521
    %523 = vmatprep.subr.mxu0 0.0
    %v524 = vand.u32 %v120, 4294901760
    %v525 = vsub.f32 %v120, %v524
    %526 = vmatpush1.msra.mxu0 %v525
    %527 = vmatprep.subr.mxu0 0.0
    %v528 = vand.u32 %v119, 4294901760
    %v529 = vsub.f32 %v119, %v528
    %530 = vmatpush1.msra.mxu0 %v529
    %531 = vmatprep.subr.mxu0 0.0
    %v532 = vand.u32 %v118, 4294901760
    %v533 = vsub.f32 %v118, %v532
    %534 = vmatpush1.msra.mxu0 %v533
    %535 = vmatprep.subr.mxu0 0.0
    %v536 = vand.u32 %v117, 4294901760
    %v537 = vsub.f32 %v117, %v536
    %538 = vmatpush1.msra.mxu0 %v537
    %539 = vmatprep.subr.mxu0 0.0
    %v540 = vand.u32 %v116, 4294901760
    %v541 = vsub.f32 %v116, %v540
    %542 = vmatpush1.msra.mxu0 %v541
    %543 = vmatprep.subr.mxu0 0.0
    %v544 = vand.u32 %v115, 4294901760
    %v545 = vsub.f32 %v115, %v544
    %546 = vmatpush1.msra.mxu0 %v545
    %547 = vmatprep.subr.mxu0 0.0
    %v548 = vand.u32 %v114, 4294901760
    %v549 = vsub.f32 %v114, %v548
    %550 = vmatpush1.msra.mxu0 %v549
    %551 = vmatprep.subr.mxu0 0.0
    %v552 = vand.u32 %v113, 4294901760
    %v553 = vsub.f32 %v113, %v552
    %554 = vmatpush1.msra.mxu0 %v553
    %555 = vmatprep.subr.mxu0 0.0
    %v556 = vand.u32 %v112, 4294901760
    %v557 = vsub.f32 %v112, %v556
    %558 = vmatpush1.msra.mxu0 %v557
    %559 = vmatprep.subr.mxu0 0.0
    %v560 = vand.u32 %v111, 4294901760
    %v561 = vsub.f32 %v111, %v560
    %562 = vmatpush1.msra.mxu0 %v561
    %563 = vmatprep.subr.mxu0 0.0
    %v564 = vand.u32 %v110, 4294901760
    %v565 = vsub.f32 %v110, %v564
    %566 = vmatpush1.msra.mxu0 %v565
    %567 = vmatprep.subr.mxu0 0.0
    %v568 = vand.u32 %v109, 4294901760
    %v569 = vsub.f32 %v109, %v568
    %570 = vmatpush1.msra.mxu0 %v569
    %571 = vmatprep.subr.mxu0 0.0
    %v572 = vand.u32 %v140, 4294901760
    %v573 = vsub.f32 %v140, %v572
    %574 = vmatpush2.msra.mxu0 %v573
    %575 = vmatprep.subr.mxu0 0.0
    %v576 = vand.u32 %v139, 4294901760
    %v577 = vsub.f32 %v139, %v576
    %578 = vmatpush2.msra.mxu0 %v577
    %579 = vmatprep.subr.mxu0 0.0
    %v580 = vand.u32 %v138, 4294901760
    %v581 = vsub.f32 %v138, %v580
    %582 = vmatpush2.msra.mxu0 %v581
    %583 = vmatprep.subr.mxu0 0.0
    %v584 = vand.u32 %v137, 4294901760
    %v585 = vsub.f32 %v137, %v584
    %586 = vmatpush2.msra.mxu0 %v585
    %587 = vmatprep.subr.mxu0 0.0
    %v588 = vand.u32 %v136, 4294901760
    %v589 = vsub.f32 %v136, %v588
    %590 = vmatpush2.msra.mxu0 %v589
    %591 = vmatprep.subr.mxu0 0.0
    %v592 = vand.u32 %v135, 4294901760
    %v593 = vsub.f32 %v135, %v592
    %594 = vmatpush2.msra.mxu0 %v593
    %595 = vmatprep.subr.mxu0 0.0
    %v596 = vand.u32 %v134, 4294901760
    %v597 = vsub.f32 %v134, %v596
    %598 = vmatpush2.msra.mxu0 %v597
    %599 = vmatprep.subr.mxu0 0.0
    %v600 = vand.u32 %v133, 4294901760
    %v601 = vsub.f32 %v133, %v600
    %602 = vmatpush2.msra.mxu0 %v601
    %603 = vmatprep.subr.mxu0 0.0
    %v604 = vand.u32 %v132, 4294901760
    %v605 = vsub.f32 %v132, %v604
    %606 = vmatpush2.msra.mxu0 %v605
    %607 = vmatprep.subr.mxu0 0.0
    %v608 = vand.u32 %v131, 4294901760
    %v609 = vsub.f32 %v131, %v608
    %610 = vmatpush2.msra.mxu0 %v609
    %611 = vmatprep.subr.mxu0 0.0
    %v612 = vand.u32 %v130, 4294901760
    %v613 = vsub.f32 %v130, %v612
    %614 = vmatpush2.msra.mxu0 %v613
    %615 = vmatprep.subr.mxu0 0.0
    %v616 = vand.u32 %v129, 4294901760
    %v617 = vsub.f32 %v129, %v616
    %618 = vmatpush2.msra.mxu0 %v617
    %619 = vmatprep.subr.mxu0 0.0
    %v620 = vand.u32 %v128, 4294901760
    %v621 = vsub.f32 %v128, %v620
    %622 = vmatpush2.msra.mxu0 %v621
    %623 = vmatprep.subr.mxu0 0.0
    %v624 = vand.u32 %v127, 4294901760
    %v625 = vsub.f32 %v127, %v624
    %626 = vmatpush2.msra.mxu0 %v625
    %627 = vmatprep.subr.mxu0 0.0
    %v628 = vand.u32 %v126, 4294901760
    %v629 = vsub.f32 %v126, %v628
    %630 = vmatpush2.msra.mxu0 %v629
    %631 = vmatprep.subr.mxu0 0.0
    %v632 = vand.u32 %v125, 4294901760
    %v633 = vsub.f32 %v125, %v632
    %634 = vmatpush2.msra.mxu0 %v633
    %v635 = vand.u32 %v106, 4294901760
    %v636 = vsub.f32 %v106, %v635
    %637 = vmatprep.mubr.f32.mxu0 %v636
    %v638 = vand.u32 %v105, 4294901760
    %v639 = vsub.f32 %v105, %v638
    %640 = vmatmul.mubr.f32.gmra.mxu0 %v639
    %v641 = vpop.f32.mrf.mxu0
    %v642 = vadd.f32 %v497, %v641
    %v643 = vpop.f32.mrf.mxu0
    %v644 = vand.u32 %v108, 4294901760
    %v645 = vsub.f32 %v108, %v644
    %646 = vmatprep.mubr.f32.mxu0 %v645
    %v647 = vand.u32 %v107, 4294901760
    %v648 = vsub.f32 %v107, %v647
    %649 = vmatmul.mubr.f32.gmra.mxu0 %v648
    %v650 = vpop.f32.mrf.mxu0
    %v651 = vadd.f32 %v504, %v650
    %v652 = vpop.f32.mrf.mxu0
    %653 = vdwg.mxu0
    %654 = vmatprep.subr.mxu0 0.0
    %v655 = vand.u32 %v124, 4294901760
    %656 = vmatpush1.msra.mxu0 %v655
    %657 = vmatprep.subr.mxu0 0.0
    %v658 = vand.u32 %v123, 4294901760
    %659 = vmatpush1.msra.mxu0 %v658
    %660 = vmatprep.subr.mxu0 0.0
    %v661 = vand.u32 %v122, 4294901760
    %662 = vmatpush1.msra.mxu0 %v661
    %663 = vmatprep.subr.mxu0 0.0
    %v664 = vand.u32 %v121, 4294901760
    %665 = vmatpush1.msra.mxu0 %v664
    %666 = vmatprep.subr.mxu0 0.0
    %v667 = vand.u32 %v120, 4294901760
    %668 = vmatpush1.msra.mxu0 %v667
    %669 = vmatprep.subr.mxu0 0.0
    %v670 = vand.u32 %v119, 4294901760
    %671 = vmatpush1.msra.mxu0 %v670
    %672 = vmatprep.subr.mxu0 0.0
    %v673 = vand.u32 %v118, 4294901760
    %674 = vmatpush1.msra.mxu0 %v673
    %675 = vmatprep.subr.mxu0 0.0
    %v676 = vand.u32 %v117, 4294901760
    %677 = vmatpush1.msra.mxu0 %v676
    %678 = vmatprep.subr.mxu0 0.0
    %v679 = vand.u32 %v116, 4294901760
    %680 = vmatpush1.msra.mxu0 %v679
    %681 = vmatprep.subr.mxu0 0.0
    %v682 = vand.u32 %v115, 4294901760
    %683 = vmatpush1.msra.mxu0 %v682
    %684 = vmatprep.subr.mxu0 0.0
    %v685 = vand.u32 %v114, 4294901760
    %686 = vmatpush1.msra.mxu0 %v685
    %687 = vmatprep.subr.mxu0 0.0
    %v688 = vand.u32 %v113, 4294901760
    %689 = vmatpush1.msra.mxu0 %v688
    %690 = vmatprep.subr.mxu0 0.0
    %v691 = vand.u32 %v112, 4294901760
    %692 = vmatpush1.msra.mxu0 %v691
    %693 = vmatprep.subr.mxu0 0.0
    %v694 = vand.u32 %v111, 4294901760
    %695 = vmatpush1.msra.mxu0 %v694
    %696 = vmatprep.subr.mxu0 0.0
    %v697 = vand.u32 %v110, 4294901760
    %698 = vmatpush1.msra.mxu0 %v697
    %699 = vmatprep.subr.mxu0 0.0
    %v700 = vand.u32 %v109, 4294901760
    %701 = vmatpush1.msra.mxu0 %v700
    %702 = vmatprep.subr.mxu0 0.0
    %v703 = vand.u32 %v140, 4294901760
    %704 = vmatpush2.msra.mxu0 %v703
    %705 = vmatprep.subr.mxu0 0.0
    %v706 = vand.u32 %v139, 4294901760
    %707 = vmatpush2.msra.mxu0 %v706
    %708 = vmatprep.subr.mxu0 0.0
    %v709 = vand.u32 %v138, 4294901760
    %710 = vmatpush2.msra.mxu0 %v709
    %711 = vmatprep.subr.mxu0 0.0
    %v712 = vand.u32 %v137, 4294901760
    %713 = vmatpush2.msra.mxu0 %v712
    %714 = vmatprep.subr.mxu0 0.0
    %v715 = vand.u32 %v136, 4294901760
    %716 = vmatpush2.msra.mxu0 %v715
    %717 = vmatprep.subr.mxu0 0.0
    %v718 = vand.u32 %v135, 4294901760
    %719 = vmatpush2.msra.mxu0 %v718
    %720 = vmatprep.subr.mxu0 0.0
    %v721 = vand.u32 %v134, 4294901760
    %722 = vmatpush2.msra.mxu0 %v721
    %723 = vmatprep.subr.mxu0 0.0
    %v724 = vand.u32 %v133, 4294901760
    %725 = vmatpush2.msra.mxu0 %v724
    %726 = vmatprep.subr.mxu0 0.0
    %v727 = vand.u32 %v132, 4294901760
    %728 = vmatpush2.msra.mxu0 %v727
    %729 = vmatprep.subr.mxu0 0.0
    %v730 = vand.u32 %v131, 4294901760
    %731 = vmatpush2.msra.mxu0 %v730
    %732 = vmatprep.subr.mxu0 0.0
    %v733 = vand.u32 %v130, 4294901760
    %734 = vmatpush2.msra.mxu0 %v733
    %735 = vmatprep.subr.mxu0 0.0
    %v736 = vand.u32 %v129, 4294901760
    %737 = vmatpush2.msra.mxu0 %v736
    %738 = vmatprep.subr.mxu0 0.0
    %v739 = vand.u32 %v128, 4294901760
    %740 = vmatpush2.msra.mxu0 %v739
    %741 = vmatprep.subr.mxu0 0.0
    %v742 = vand.u32 %v127, 4294901760
    %743 = vmatpush2.msra.mxu0 %v742
    %744 = vmatprep.subr.mxu0 0.0
    %v745 = vand.u32 %v126, 4294901760
    %746 = vmatpush2.msra.mxu0 %v745
    %747 = vmatprep.subr.mxu0 0.0
    %v748 = vand.u32 %v125, 4294901760
    %749 = vmatpush2.msra.mxu0 %v748
    %v750 = vand.u32 %v106, 4294901760
    %v751 = vsub.f32 %v106, %v750
    %v752 = vand.u32 %v751, 4294901760
    %753 = vmatprep.mubr.f32.mxu0 %v752
    %v754 = vand.u32 %v105, 4294901760
    %v755 = vsub.f32 %v105, %v754
    %v756 = vand.u32 %v755, 4294901760
    %757 = vmatmul.mubr.f32.gmra.mxu0 %v756
    %v758 = vpop.f32.mrf.mxu0
    %v759 = vadd.f32 %v642, %v758
    %v760 = vpop.f32.mrf.mxu0
    %v761 = vand.u32 %v108, 4294901760
    %v762 = vsub.f32 %v108, %v761
    %v763 = vand.u32 %v762, 4294901760
    %764 = vmatprep.mubr.f32.mxu0 %v763
    %v765 = vand.u32 %v107, 4294901760
    %v766 = vsub.f32 %v107, %v765
    %v767 = vand.u32 %v766, 4294901760
    %768 = vmatmul.mubr.f32.gmra.mxu0 %v767
    %v769 = vpop.f32.mrf.mxu0
    %v770 = vadd.f32 %v651, %v769
    %v771 = vpop.f32.mrf.mxu0
    %772 = vdwg.mxu0
    %773 = vmatprep.subr.mxu0 0.0
    %v774 = vand.u32 %v124, 4294901760
    %v775 = vsub.f32 %v124, %v774
    %v776 = vand.u32 %v775, 4294901760
    %777 = vmatpush1.msra.mxu0 %v776
    %778 = vmatprep.subr.mxu0 0.0
    %v779 = vand.u32 %v123, 4294901760
    %v780 = vsub.f32 %v123, %v779
    %v781 = vand.u32 %v780, 4294901760
    %782 = vmatpush1.msra.mxu0 %v781
    %783 = vmatprep.subr.mxu0 0.0
    %v784 = vand.u32 %v122, 4294901760
    %v785 = vsub.f32 %v122, %v784
    %v786 = vand.u32 %v785, 4294901760
    %787 = vmatpush1.msra.mxu0 %v786
    %788 = vmatprep.subr.mxu0 0.0
    %v789 = vand.u32 %v121, 4294901760
    %v790 = vsub.f32 %v121, %v789
    %v791 = vand.u32 %v790, 4294901760
    %792 = vmatpush1.msra.mxu0 %v791
    %793 = vmatprep.subr.mxu0 0.0
    %v794 = vand.u32 %v120, 4294901760
    %v795 = vsub.f32 %v120, %v794
    %v796 = vand.u32 %v795, 4294901760
    %797 = vmatpush1.msra.mxu0 %v796
    %798 = vmatprep.subr.mxu0 0.0
    %v799 = vand.u32 %v119, 4294901760
    %v800 = vsub.f32 %v119, %v799
    %v801 = vand.u32 %v800, 4294901760
    %802 = vmatpush1.msra.mxu0 %v801
    %803 = vmatprep.subr.mxu0 0.0
    %v804 = vand.u32 %v118, 4294901760
    %v805 = vsub.f32 %v118, %v804
    %v806 = vand.u32 %v805, 4294901760
    %807 = vmatpush1.msra.mxu0 %v806
    %808 = vmatprep.subr.mxu0 0.0
    %v809 = vand.u32 %v117, 4294901760
    %v810 = vsub.f32 %v117, %v809
    %v811 = vand.u32 %v810, 4294901760
    %812 = vmatpush1.msra.mxu0 %v811
    %813 = vmatprep.subr.mxu0 0.0
    %v814 = vand.u32 %v116, 4294901760
    %v815 = vsub.f32 %v116, %v814
    %v816 = vand.u32 %v815, 4294901760
    %817 = vmatpush1.msra.mxu0 %v816
    %818 = vmatprep.subr.mxu0 0.0
    %v819 = vand.u32 %v115, 4294901760
    %v820 = vsub.f32 %v115, %v819
    %v821 = vand.u32 %v820, 4294901760
    %822 = vmatpush1.msra.mxu0 %v821
    %823 = vmatprep.subr.mxu0 0.0
    %v824 = vand.u32 %v114, 4294901760
    %v825 = vsub.f32 %v114, %v824
    %v826 = vand.u32 %v825, 4294901760
    %827 = vmatpush1.msra.mxu0 %v826
    %828 = vmatprep.subr.mxu0 0.0
    %v829 = vand.u32 %v113, 4294901760
    %v830 = vsub.f32 %v113, %v829
    %v831 = vand.u32 %v830, 4294901760
    %832 = vmatpush1.msra.mxu0 %v831
    %833 = vmatprep.subr.mxu0 0.0
    %v834 = vand.u32 %v112, 4294901760
    %v835 = vsub.f32 %v112, %v834
    %v836 = vand.u32 %v835, 4294901760
    %837 = vmatpush1.msra.mxu0 %v836
    %838 = vmatprep.subr.mxu0 0.0
    %v839 = vand.u32 %v111, 4294901760
    %v840 = vsub.f32 %v111, %v839
    %v841 = vand.u32 %v840, 4294901760
    %842 = vmatpush1.msra.mxu0 %v841
    %843 = vmatprep.subr.mxu0 0.0
    %v844 = vand.u32 %v110, 4294901760
    %v845 = vsub.f32 %v110, %v844
    %v846 = vand.u32 %v845, 4294901760
    %847 = vmatpush1.msra.mxu0 %v846
    %848 = vmatprep.subr.mxu0 0.0
    %v849 = vand.u32 %v109, 4294901760
    %v850 = vsub.f32 %v109, %v849
    %v851 = vand.u32 %v850, 4294901760
    %852 = vmatpush1.msra.mxu0 %v851
    %853 = vmatprep.subr.mxu0 0.0
    %v854 = vand.u32 %v140, 4294901760
    %v855 = vsub.f32 %v140, %v854
    %v856 = vand.u32 %v855, 4294901760
    %857 = vmatpush2.msra.mxu0 %v856
    %858 = vmatprep.subr.mxu0 0.0
    %v859 = vand.u32 %v139, 4294901760
    %v860 = vsub.f32 %v139, %v859
    %v861 = vand.u32 %v860, 4294901760
    %862 = vmatpush2.msra.mxu0 %v861
    %863 = vmatprep.subr.mxu0 0.0
    %v864 = vand.u32 %v138, 4294901760
    %v865 = vsub.f32 %v138, %v864
    %v866 = vand.u32 %v865, 4294901760
    %867 = vmatpush2.msra.mxu0 %v866
    %868 = vmatprep.subr.mxu0 0.0
    %v869 = vand.u32 %v137, 4294901760
    %v870 = vsub.f32 %v137, %v869
    %v871 = vand.u32 %v870, 4294901760
    %872 = vmatpush2.msra.mxu0 %v871
    %873 = vmatprep.subr.mxu0 0.0
    %v874 = vand.u32 %v136, 4294901760
    %v875 = vsub.f32 %v136, %v874
    %v876 = vand.u32 %v875, 4294901760
    %877 = vmatpush2.msra.mxu0 %v876
    %878 = vmatprep.subr.mxu0 0.0
    %v879 = vand.u32 %v135, 4294901760
    %v880 = vsub.f32 %v135, %v879
    %v881 = vand.u32 %v880, 4294901760
    %882 = vmatpush2.msra.mxu0 %v881
    %883 = vmatprep.subr.mxu0 0.0
    %v884 = vand.u32 %v134, 4294901760
    %v885 = vsub.f32 %v134, %v884
    %v886 = vand.u32 %v885, 4294901760
    %887 = vmatpush2.msra.mxu0 %v886
    %888 = vmatprep.subr.mxu0 0.0
    %v889 = vand.u32 %v133, 4294901760
    %v890 = vsub.f32 %v133, %v889
    %v891 = vand.u32 %v890, 4294901760
    %892 = vmatpush2.msra.mxu0 %v891
    %893 = vmatprep.subr.mxu0 0.0
    %v894 = vand.u32 %v132, 4294901760
    %v895 = vsub.f32 %v132, %v894
    %v896 = vand.u32 %v895, 4294901760
    %897 = vmatpush2.msra.mxu0 %v896
    %898 = vmatprep.subr.mxu0 0.0
    %v899 = vand.u32 %v131, 4294901760
    %v900 = vsub.f32 %v131, %v899
    %v901 = vand.u32 %v900, 4294901760
    %902 = vmatpush2.msra.mxu0 %v901
    %903 = vmatprep.subr.mxu0 0.0
    %v904 = vand.u32 %v130, 4294901760
    %v905 = vsub.f32 %v130, %v904
    %v906 = vand.u32 %v905, 4294901760
    %907 = vmatpush2.msra.mxu0 %v906
    %908 = vmatprep.subr.mxu0 0.0
    %v909 = vand.u32 %v129, 4294901760
    %v910 = vsub.f32 %v129, %v909
    %v911 = vand.u32 %v910, 4294901760
    %912 = vmatpush2.msra.mxu0 %v911
    %913 = vmatprep.subr.mxu0 0.0
    %v914 = vand.u32 %v128, 4294901760
    %v915 = vsub.f32 %v128, %v914
    %v916 = vand.u32 %v915, 4294901760
    %917 = vmatpush2.msra.mxu0 %v916
    %918 = vmatprep.subr.mxu0 0.0
    %v919 = vand.u32 %v127, 4294901760
    %v920 = vsub.f32 %v127, %v919
    %v921 = vand.u32 %v920, 4294901760
    %922 = vmatpush2.msra.mxu0 %v921
    %923 = vmatprep.subr.mxu0 0.0
    %v924 = vand.u32 %v126, 4294901760
    %v925 = vsub.f32 %v126, %v924
    %v926 = vand.u32 %v925, 4294901760
    %927 = vmatpush2.msra.mxu0 %v926
    %928 = vmatprep.subr.mxu0 0.0
    %v929 = vand.u32 %v125, 4294901760
    %v930 = vsub.f32 %v125, %v929
    %v931 = vand.u32 %v930, 4294901760
    %932 = vmatpush2.msra.mxu0 %v931
    %v933 = vand.u32 %v106, 4294901760
    %934 = vmatprep.mubr.f32.mxu0 %v933
    %v935 = vand.u32 %v105, 4294901760
    %936 = vmatmul.mubr.f32.gmra.mxu0 %v935
    %v937 = vpop.f32.mrf.mxu0
    %v938 = vadd.f32 %v759, %v937
    %v939 = vpop.f32.mrf.mxu0
    %v940 = vand.u32 %v108, 4294901760
    %941 = vmatprep.mubr.f32.mxu0 %v940
    %v942 = vand.u32 %v107, 4294901760
    %943 = vmatmul.mubr.f32.gmra.mxu0 %v942
    %v944 = vpop.f32.mrf.mxu0
    %v945 = vadd.f32 %v770, %v944
    %v946 = vpop.f32.mrf.mxu0
    %947 = vdwg.mxu0
    %948 = vmatprep.subr.mxu0 0.0
    %v949 = vand.u32 %v124, 4294901760
    %950 = vmatpush1.msra.mxu0 %v949
    %951 = vmatprep.subr.mxu0 0.0
    %v952 = vand.u32 %v123, 4294901760
    %953 = vmatpush1.msra.mxu0 %v952
    %954 = vmatprep.subr.mxu0 0.0
    %v955 = vand.u32 %v122, 4294901760
    %956 = vmatpush1.msra.mxu0 %v955
    %957 = vmatprep.subr.mxu0 0.0
    %v958 = vand.u32 %v121, 4294901760
    %959 = vmatpush1.msra.mxu0 %v958
    %960 = vmatprep.subr.mxu0 0.0
    %v961 = vand.u32 %v120, 4294901760
    %962 = vmatpush1.msra.mxu0 %v961
    %963 = vmatprep.subr.mxu0 0.0
    %v964 = vand.u32 %v119, 4294901760
    %965 = vmatpush1.msra.mxu0 %v964
    %966 = vmatprep.subr.mxu0 0.0
    %v967 = vand.u32 %v118, 4294901760
    %968 = vmatpush1.msra.mxu0 %v967
    %969 = vmatprep.subr.mxu0 0.0
    %v970 = vand.u32 %v117, 4294901760
    %971 = vmatpush1.msra.mxu0 %v970
    %972 = vmatprep.subr.mxu0 0.0
    %v973 = vand.u32 %v116, 4294901760
    %974 = vmatpush1.msra.mxu0 %v973
    %975 = vmatprep.subr.mxu0 0.0
    %v976 = vand.u32 %v115, 4294901760
    %977 = vmatpush1.msra.mxu0 %v976
    %978 = vmatprep.subr.mxu0 0.0
    %v979 = vand.u32 %v114, 4294901760
    %980 = vmatpush1.msra.mxu0 %v979
    %981 = vmatprep.subr.mxu0 0.0
    %v982 = vand.u32 %v113, 4294901760
    %983 = vmatpush1.msra.mxu0 %v982
    %984 = vmatprep.subr.mxu0 0.0
    %v985 = vand.u32 %v112, 4294901760
    %986 = vmatpush1.msra.mxu0 %v985
    %987 = vmatprep.subr.mxu0 0.0
    %v988 = vand.u32 %v111, 4294901760
    %989 = vmatpush1.msra.mxu0 %v988
    %990 = vmatprep.subr.mxu0 0.0
    %v991 = vand.u32 %v110, 4294901760
    %992 = vmatpush1.msra.mxu0 %v991
    %993 = vmatprep.subr.mxu0 0.0
    %v994 = vand.u32 %v109, 4294901760
    %995 = vmatpush1.msra.mxu0 %v994
    %996 = vmatprep.subr.mxu0 0.0
    %v997 = vand.u32 %v140, 4294901760
    %998 = vmatpush2.msra.mxu0 %v997
    %999 = vmatprep.subr.mxu0 0.0
    %v1000 = vand.u32 %v139, 4294901760
    %1001 = vmatpush2.msra.mxu0 %v1000
    %1002 = vmatprep.subr.mxu0 0.0
    %v1003 = vand.u32 %v138, 4294901760
    %1004 = vmatpush2.msra.mxu0 %v1003
    %1005 = vmatprep.subr.mxu0 0.0
    %v1006 = vand.u32 %v137, 4294901760
    %1007 = vmatpush2.msra.mxu0 %v1006
    %1008 = vmatprep.subr.mxu0 0.0
    %v1009 = vand.u32 %v136, 4294901760
    %1010 = vmatpush2.msra.mxu0 %v1009
    %1011 = vmatprep.subr.mxu0 0.0
    %v1012 = vand.u32 %v135, 4294901760
    %1013 = vmatpush2.msra.mxu0 %v1012
    %1014 = vmatprep.subr.mxu0 0.0
    %v1015 = vand.u32 %v134, 4294901760
    %1016 = vmatpush2.msra.mxu0 %v1015
    %1017 = vmatprep.subr.mxu0 0.0
    %v1018 = vand.u32 %v133, 4294901760
    %1019 = vmatpush2.msra.mxu0 %v1018
    %1020 = vmatprep.subr.mxu0 0.0
    %v1021 = vand.u32 %v132, 4294901760
    %1022 = vmatpush2.msra.mxu0 %v1021
    %1023 = vmatprep.subr.mxu0 0.0
    %v1024 = vand.u32 %v131, 4294901760
    %1025 = vmatpush2.msra.mxu0 %v1024
    %1026 = vmatprep.subr.mxu0 0.0
    %v1027 = vand.u32 %v130, 4294901760
    %1028 = vmatpush2.msra.mxu0 %v1027
    %1029 = vmatprep.subr.mxu0 0.0
    %v1030 = vand.u32 %v129, 4294901760
    %1031 = vmatpush2.msra.mxu0 %v1030
    %1032 = vmatprep.subr.mxu0 0.0
    %v1033 = vand.u32 %v128, 4294901760
    %1034 = vmatpush2.msra.mxu0 %v1033
    %1035 = vmatprep.subr.mxu0 0.0
    %v1036 = vand.u32 %v127, 4294901760
    %1037 = vmatpush2.msra.mxu0 %v1036
    %1038 = vmatprep.subr.mxu0 0.0
    %v1039 = vand.u32 %v126, 4294901760
    %1040 = vmatpush2.msra.mxu0 %v1039
    %1041 = vmatprep.subr.mxu0 0.0
    %v1042 = vand.u32 %v125, 4294901760
    %1043 = vmatpush2.msra.mxu0 %v1042
    %v1044 = vand.u32 %v106, 4294901760
    %1045 = vmatprep.mubr.f32.mxu0 %v1044
    %v1046 = vand.u32 %v105, 4294901760
    %1047 = vmatmul.mubr.f32.gmra.mxu0 %v1046
    %v1048 = vpop.f32.mrf.mxu0
    %v1049 = vadd.f32 %v938, %v1048
    %v1050 = vpop.f32.mrf.mxu0
    %v1051 = vand.u32 %v108, 4294901760
    %1052 = vmatprep.mubr.f32.mxu0 %v1051
    %v1053 = vand.u32 %v107, 4294901760
    %1054 = vmatmul.mubr.f32.gmra.mxu0 %v1053
    %v1055 = vpop.f32.mrf.mxu0
    %v1056 = vadd.f32 %v945, %v1055
    %v1057 = vpop.f32.mrf.mxu0
    %1058 = vdwg.mxu0
    %1059 = vset.pattern.permute.xlu0 0
    %1060 = vperm.xlu0 %1059, %v31
    %v1061 = vpop.permute.xlu0 %1060
    %1062 = vset.pattern.permute.xlu0 0
    %1063 = vperm.xlu0 %1062, %v32
    %v1064 = vpop.permute.xlu0 %1063
    %vm1065 = vcmp.eq.s32.totalorder %v89, %v1061
    %vm1066 = vcmp.eq.s32.totalorder %v89, %v1064
    %v1067 = vsel %vm1065, 1, 0
    %v1068 = vsel %vm1066, 1, 0
    %v1069 = vcvt.s32.f32 %v1067
    %v1070 = vcvt.s32.f32 %v1068
    %v1071 = vld [vmem:[%s5] sm:$0xff]
    %v1072 = vld [vmem:[%s5 + $0x8] sm:$0xff]
    %v1073 = vld [vmem:[%s5 + $0x10] sm:$0xff]
    %v1074 = vld [vmem:[%s5 + $0x18] sm:$0xff]
    %v1075 = vld [vmem:[%s5 + $0x20] sm:$0xff]
    %v1076 = vld [vmem:[%s5 + $0x28] sm:$0xff]
    %v1077 = vld [vmem:[%s5 + $0x30] sm:$0xff]
    %v1078 = vld [vmem:[%s5 + $0x38] sm:$0xff]
    %vm1079 = vcmask 523264
    %v1081 = vsel %vm1079, %v1069, 0
    %v1084 = vsel %vm1079, %v1070, 0
    %1086 = vmatprep.subr.mxu0 0.0
    %1087 = vmatpush1.msra.mxu0 0.0
    %1088 = vmatprep.subr.mxu0 0.0
    %1089 = vmatpush1.msra.mxu0 0.0
    %1090 = vmatprep.subr.mxu0 0.0
    %1091 = vmatpush1.msra.mxu0 0.0
    %1092 = vmatprep.subr.mxu0 0.0
    %1093 = vmatpush1.msra.mxu0 0.0
    %1094 = vmatprep.subr.mxu0 0.0
    %1095 = vmatpush1.msra.mxu0 0.0
    %1096 = vmatprep.subr.mxu0 0.0
    %1097 = vmatpush1.msra.mxu0 0.0
    %1098 = vmatprep.subr.mxu0 0.0
    %1099 = vmatpush1.msra.mxu0 0.0
    %1100 = vmatprep.subr.mxu0 0.0
    %1101 = vmatpush1.msra.mxu0 0.0
    %1102 = vmatprep.subr.mxu0 0.0
    %v1103 = vand.u32 %v1078, 4294901760
    %1104 = vmatpush1.msra.mxu0 %v1103
    %1105 = vmatprep.subr.mxu0 0.0
    %v1106 = vand.u32 %v1077, 4294901760
    %1107 = vmatpush1.msra.mxu0 %v1106
    %1108 = vmatprep.subr.mxu0 0.0
    %v1109 = vand.u32 %v1076, 4294901760
    %1110 = vmatpush1.msra.mxu0 %v1109
    %1111 = vmatprep.subr.mxu0 0.0
    %v1112 = vand.u32 %v1075, 4294901760
    %1113 = vmatpush1.msra.mxu0 %v1112
    %1114 = vmatprep.subr.mxu0 0.0
    %v1115 = vand.u32 %v1074, 4294901760
    %1116 = vmatpush1.msra.mxu0 %v1115
    %1117 = vmatprep.subr.mxu0 0.0
    %v1118 = vand.u32 %v1073, 4294901760
    %1119 = vmatpush1.msra.mxu0 %v1118
    %1120 = vmatprep.subr.mxu0 0.0
    %v1121 = vand.u32 %v1072, 4294901760
    %1122 = vmatpush1.msra.mxu0 %v1121
    %1123 = vmatprep.subr.mxu0 0.0
    %v1124 = vand.u32 %v1071, 4294901760
    %1125 = vmatpush1.msra.mxu0 %v1124
    %1126 = vmatprep.subr.mxu0 0.0
    %1127 = vmatpush2.msra.mxu0 0.0
    %1128 = vmatprep.subr.mxu0 0.0
    %1129 = vmatpush2.msra.mxu0 0.0
    %1130 = vmatprep.subr.mxu0 0.0
    %1131 = vmatpush2.msra.mxu0 0.0
    %1132 = vmatprep.subr.mxu0 0.0
    %1133 = vmatpush2.msra.mxu0 0.0
    %1134 = vmatprep.subr.mxu0 0.0
    %1135 = vmatpush2.msra.mxu0 0.0
    %1136 = vmatprep.subr.mxu0 0.0
    %1137 = vmatpush2.msra.mxu0 0.0
    %1138 = vmatprep.subr.mxu0 0.0
    %1139 = vmatpush2.msra.mxu0 0.0
    %1140 = vmatprep.subr.mxu0 0.0
    %1141 = vmatpush2.msra.mxu0 0.0
    %1142 = vmatprep.subr.mxu0 0.0
    %1143 = vmatpush2.msra.mxu0 0.0
    %1144 = vmatprep.subr.mxu0 0.0
    %1145 = vmatpush2.msra.mxu0 0.0
    %1146 = vmatprep.subr.mxu0 0.0
    %1147 = vmatpush2.msra.mxu0 0.0
    %1148 = vmatprep.subr.mxu0 0.0
    %1149 = vmatpush2.msra.mxu0 0.0
    %1150 = vmatprep.subr.mxu0 0.0
    %1151 = vmatpush2.msra.mxu0 0.0
    %1152 = vmatprep.subr.mxu0 0.0
    %1153 = vmatpush2.msra.mxu0 0.0
    %1154 = vmatprep.subr.mxu0 0.0
    %1155 = vmatpush2.msra.mxu0 0.0
    %1156 = vmatprep.subr.mxu0 0.0
    %1157 = vmatpush2.msra.mxu0 0.0
    %1158 = vmatprep.mubr.f32.mxu0 0.0
    %v1159 = vand.u32 %v1081, 4294901760
    %v1160 = vsub.f32 %v1081, %v1159
    %v1161 = vand.u32 %v1160, 4294901760
    %v1162 = vsub.f32 %v1160, %v1161
    %v1163 = vand.u32 %v1162, 4294901760
    %1164 = vmatmul.mubr.f32.gmra.mxu0 %v1163
    %v1165 = vpop.f32.mrf.mxu0
    %v1166 = vadd.f32 0.0, %v1165
    %v1167 = vpop.f32.mrf.mxu0
    %1168 = vmatprep.mubr.f32.mxu0 0.0
    %v1169 = vand.u32 %v1084, 4294901760
    %v1170 = vsub.f32 %v1084, %v1169
    %v1171 = vand.u32 %v1170, 4294901760
    %v1172 = vsub.f32 %v1170, %v1171
    %v1173 = vand.u32 %v1172, 4294901760
    %1174 = vmatmul.mubr.f32.gmra.mxu0 %v1173
    %v1175 = vpop.f32.mrf.mxu0
    %v1176 = vadd.f32 0.0, %v1175
    %v1177 = vpop.f32.mrf.mxu0
    %1178 = vdwg.mxu0
    %1179 = vmatprep.subr.mxu0 0.0
    %1180 = vmatpush1.msra.mxu0 0.0
    %1181 = vmatprep.subr.mxu0 0.0
    %1182 = vmatpush1.msra.mxu0 0.0
    %1183 = vmatprep.subr.mxu0 0.0
    %1184 = vmatpush1.msra.mxu0 0.0
    %1185 = vmatprep.subr.mxu0 0.0
    %1186 = vmatpush1.msra.mxu0 0.0
    %1187 = vmatprep.subr.mxu0 0.0
    %1188 = vmatpush1.msra.mxu0 0.0
    %1189 = vmatprep.subr.mxu0 0.0
    %1190 = vmatpush1.msra.mxu0 0.0
    %1191 = vmatprep.subr.mxu0 0.0
    %1192 = vmatpush1.msra.mxu0 0.0
    %1193 = vmatprep.subr.mxu0 0.0
    %1194 = vmatpush1.msra.mxu0 0.0
    %1195 = vmatprep.subr.mxu0 0.0
    %v1196 = vand.u32 %v1078, 4294901760
    %v1197 = vsub.f32 %v1078, %v1196
    %v1198 = vand.u32 %v1197, 4294901760
    %v1199 = vsub.f32 %v1197, %v1198
    %v1200 = vand.u32 %v1199, 4294901760
    %1201 = vmatpush1.msra.mxu0 %v1200
    %1202 = vmatprep.subr.mxu0 0.0
    %v1203 = vand.u32 %v1077, 4294901760
    %v1204 = vsub.f32 %v1077, %v1203
    %v1205 = vand.u32 %v1204, 4294901760
    %v1206 = vsub.f32 %v1204, %v1205
    %v1207 = vand.u32 %v1206, 4294901760
    %1208 = vmatpush1.msra.mxu0 %v1207
    %1209 = vmatprep.subr.mxu0 0.0
    %v1210 = vand.u32 %v1076, 4294901760
    %v1211 = vsub.f32 %v1076, %v1210
    %v1212 = vand.u32 %v1211, 4294901760
    %v1213 = vsub.f32 %v1211, %v1212
    %v1214 = vand.u32 %v1213, 4294901760
    %1215 = vmatpush1.msra.mxu0 %v1214
    %1216 = vmatprep.subr.mxu0 0.0
    %v1217 = vand.u32 %v1075, 4294901760
    %v1218 = vsub.f32 %v1075, %v1217
    %v1219 = vand.u32 %v1218, 4294901760
    %v1220 = vsub.f32 %v1218, %v1219
    %v1221 = vand.u32 %v1220, 4294901760
    %1222 = vmatpush1.msra.mxu0 %v1221
    %1223 = vmatprep.subr.mxu0 0.0
    %v1224 = vand.u32 %v1074, 4294901760
    %v1225 = vsub.f32 %v1074, %v1224
    %v1226 = vand.u32 %v1225, 4294901760
    %v1227 = vsub.f32 %v1225, %v1226
    %v1228 = vand.u32 %v1227, 4294901760
    %1229 = vmatpush1.msra.mxu0 %v1228
    %1230 = vmatprep.subr.mxu0 0.0
    %v1231 = vand.u32 %v1073, 4294901760
    %v1232 = vsub.f32 %v1073, %v1231
    %v1233 = vand.u32 %v1232, 4294901760
    %v1234 = vsub.f32 %v1232, %v1233
    %v1235 = vand.u32 %v1234, 4294901760
    %1236 = vmatpush1.msra.mxu0 %v1235
    %1237 = vmatprep.subr.mxu0 0.0
    %v1238 = vand.u32 %v1072, 4294901760
    %v1239 = vsub.f32 %v1072, %v1238
    %v1240 = vand.u32 %v1239, 4294901760
    %v1241 = vsub.f32 %v1239, %v1240
    %v1242 = vand.u32 %v1241, 4294901760
    %1243 = vmatpush1.msra.mxu0 %v1242
    %1244 = vmatprep.subr.mxu0 0.0
    %v1245 = vand.u32 %v1071, 4294901760
    %v1246 = vsub.f32 %v1071, %v1245
    %v1247 = vand.u32 %v1246, 4294901760
    %v1248 = vsub.f32 %v1246, %v1247
    %v1249 = vand.u32 %v1248, 4294901760
    %1250 = vmatpush1.msra.mxu0 %v1249
    %1251 = vmatprep.subr.mxu0 0.0
    %1252 = vmatpush2.msra.mxu0 0.0
    %1253 = vmatprep.subr.mxu0 0.0
    %1254 = vmatpush2.msra.mxu0 0.0
    %1255 = vmatprep.subr.mxu0 0.0
    %1256 = vmatpush2.msra.mxu0 0.0
    %1257 = vmatprep.subr.mxu0 0.0
    %1258 = vmatpush2.msra.mxu0 0.0
    %1259 = vmatprep.subr.mxu0 0.0
    %1260 = vmatpush2.msra.mxu0 0.0
    %1261 = vmatprep.subr.mxu0 0.0
    %1262 = vmatpush2.msra.mxu0 0.0
    %1263 = vmatprep.subr.mxu0 0.0
    %1264 = vmatpush2.msra.mxu0 0.0
    %1265 = vmatprep.subr.mxu0 0.0
    %1266 = vmatpush2.msra.mxu0 0.0
    %1267 = vmatprep.subr.mxu0 0.0
    %1268 = vmatpush2.msra.mxu0 0.0
    %1269 = vmatprep.subr.mxu0 0.0
    %1270 = vmatpush2.msra.mxu0 0.0
    %1271 = vmatprep.subr.mxu0 0.0
    %1272 = vmatpush2.msra.mxu0 0.0
    %1273 = vmatprep.subr.mxu0 0.0
    %1274 = vmatpush2.msra.mxu0 0.0
    %1275 = vmatprep.subr.mxu0 0.0
    %1276 = vmatpush2.msra.mxu0 0.0
    %1277 = vmatprep.subr.mxu0 0.0
    %1278 = vmatpush2.msra.mxu0 0.0
    %1279 = vmatprep.subr.mxu0 0.0
    %1280 = vmatpush2.msra.mxu0 0.0
    %1281 = vmatprep.subr.mxu0 0.0
    %1282 = vmatpush2.msra.mxu0 0.0
    %1283 = vmatprep.mubr.f32.mxu0 0.0
    %v1284 = vand.u32 %v1081, 4294901760
    %1285 = vmatmul.mubr.f32.gmra.mxu0 %v1284
    %v1286 = vpop.f32.mrf.mxu0
    %v1287 = vadd.f32 %v1166, %v1286
    %v1288 = vpop.f32.mrf.mxu0
    %1289 = vmatprep.mubr.f32.mxu0 0.0
    %v1290 = vand.u32 %v1084, 4294901760
    %1291 = vmatmul.mubr.f32.gmra.mxu0 %v1290
    %v1292 = vpop.f32.mrf.mxu0
    %v1293 = vadd.f32 %v1176, %v1292
    %v1294 = vpop.f32.mrf.mxu0
    %1295 = vdwg.mxu0
    %1296 = vmatprep.subr.mxu0 0.0
    %1297 = vmatpush1.msra.mxu0 0.0
    %1298 = vmatprep.subr.mxu0 0.0
    %1299 = vmatpush1.msra.mxu0 0.0
    %1300 = vmatprep.subr.mxu0 0.0
    %1301 = vmatpush1.msra.mxu0 0.0
    %1302 = vmatprep.subr.mxu0 0.0
    %1303 = vmatpush1.msra.mxu0 0.0
    %1304 = vmatprep.subr.mxu0 0.0
    %1305 = vmatpush1.msra.mxu0 0.0
    %1306 = vmatprep.subr.mxu0 0.0
    %1307 = vmatpush1.msra.mxu0 0.0
    %1308 = vmatprep.subr.mxu0 0.0
    %1309 = vmatpush1.msra.mxu0 0.0
    %1310 = vmatprep.subr.mxu0 0.0
    %1311 = vmatpush1.msra.mxu0 0.0
    %1312 = vmatprep.subr.mxu0 0.0
    %v1313 = vand.u32 %v1078, 4294901760
    %v1314 = vsub.f32 %v1078, %v1313
    %1315 = vmatpush1.msra.mxu0 %v1314
    %1316 = vmatprep.subr.mxu0 0.0
    %v1317 = vand.u32 %v1077, 4294901760
    %v1318 = vsub.f32 %v1077, %v1317
    %1319 = vmatpush1.msra.mxu0 %v1318
    %1320 = vmatprep.subr.mxu0 0.0
    %v1321 = vand.u32 %v1076, 4294901760
    %v1322 = vsub.f32 %v1076, %v1321
    %1323 = vmatpush1.msra.mxu0 %v1322
    %1324 = vmatprep.subr.mxu0 0.0
    %v1325 = vand.u32 %v1075, 4294901760
    %v1326 = vsub.f32 %v1075, %v1325
    %1327 = vmatpush1.msra.mxu0 %v1326
    %1328 = vmatprep.subr.mxu0 0.0
    %v1329 = vand.u32 %v1074, 4294901760
    %v1330 = vsub.f32 %v1074, %v1329
    %1331 = vmatpush1.msra.mxu0 %v1330
    %1332 = vmatprep.subr.mxu0 0.0
    %v1333 = vand.u32 %v1073, 4294901760
    %v1334 = vsub.f32 %v1073, %v1333
    %1335 = vmatpush1.msra.mxu0 %v1334
    %1336 = vmatprep.subr.mxu0 0.0
    %v1337 = vand.u32 %v1072, 4294901760
    %v1338 = vsub.f32 %v1072, %v1337
    %1339 = vmatpush1.msra.mxu0 %v1338
    %1340 = vmatprep.subr.mxu0 0.0
    %v1341 = vand.u32 %v1071, 4294901760
    %v1342 = vsub.f32 %v1071, %v1341
    %1343 = vmatpush1.msra.mxu0 %v1342
    %1344 = vmatprep.subr.mxu0 0.0
    %1345 = vmatpush2.msra.mxu0 0.0
    %1346 = vmatprep.subr.mxu0 0.0
    %1347 = vmatpush2.msra.mxu0 0.0
    %1348 = vmatprep.subr.mxu0 0.0
    %1349 = vmatpush2.msra.mxu0 0.0
    %1350 = vmatprep.subr.mxu0 0.0
    %1351 = vmatpush2.msra.mxu0 0.0
    %1352 = vmatprep.subr.mxu0 0.0
    %1353 = vmatpush2.msra.mxu0 0.0
    %1354 = vmatprep.subr.mxu0 0.0
    %1355 = vmatpush2.msra.mxu0 0.0
    %1356 = vmatprep.subr.mxu0 0.0
    %1357 = vmatpush2.msra.mxu0 0.0
    %1358 = vmatprep.subr.mxu0 0.0
    %1359 = vmatpush2.msra.mxu0 0.0
    %1360 = vmatprep.subr.mxu0 0.0
    %1361 = vmatpush2.msra.mxu0 0.0
    %1362 = vmatprep.subr.mxu0 0.0
    %1363 = vmatpush2.msra.mxu0 0.0
    %1364 = vmatprep.subr.mxu0 0.0
    %1365 = vmatpush2.msra.mxu0 0.0
    %1366 = vmatprep.subr.mxu0 0.0
    %1367 = vmatpush2.msra.mxu0 0.0
    %1368 = vmatprep.subr.mxu0 0.0
    %1369 = vmatpush2.msra.mxu0 0.0
    %1370 = vmatprep.subr.mxu0 0.0
    %1371 = vmatpush2.msra.mxu0 0.0
    %1372 = vmatprep.subr.mxu0 0.0
    %1373 = vmatpush2.msra.mxu0 0.0
    %1374 = vmatprep.subr.mxu0 0.0
    %1375 = vmatpush2.msra.mxu0 0.0
    %1376 = vmatprep.mubr.f32.mxu0 0.0
    %v1377 = vand.u32 %v1081, 4294901760
    %v1378 = vsub.f32 %v1081, %v1377
    %1379 = vmatmul.mubr.f32.gmra.mxu0 %v1378
    %v1380 = vpop.f32.mrf.mxu0
    %v1381 = vadd.f32 %v1287, %v1380
    %v1382 = vpop.f32.mrf.mxu0
    %1383 = vmatprep.mubr.f32.mxu0 0.0
    %v1384 = vand.u32 %v1084, 4294901760
    %v1385 = vsub.f32 %v1084, %v1384
    %1386 = vmatmul.mubr.f32.gmra.mxu0 %v1385
    %v1387 = vpop.f32.mrf.mxu0
    %v1388 = vadd.f32 %v1293, %v1387
    %v1389 = vpop.f32.mrf.mxu0
    %1390 = vdwg.mxu0
    %1391 = vmatprep.subr.mxu0 0.0
    %1392 = vmatpush1.msra.mxu0 0.0
    %1393 = vmatprep.subr.mxu0 0.0
    %1394 = vmatpush1.msra.mxu0 0.0
    %1395 = vmatprep.subr.mxu0 0.0
    %1396 = vmatpush1.msra.mxu0 0.0
    %1397 = vmatprep.subr.mxu0 0.0
    %1398 = vmatpush1.msra.mxu0 0.0
    %1399 = vmatprep.subr.mxu0 0.0
    %1400 = vmatpush1.msra.mxu0 0.0
    %1401 = vmatprep.subr.mxu0 0.0
    %1402 = vmatpush1.msra.mxu0 0.0
    %1403 = vmatprep.subr.mxu0 0.0
    %1404 = vmatpush1.msra.mxu0 0.0
    %1405 = vmatprep.subr.mxu0 0.0
    %1406 = vmatpush1.msra.mxu0 0.0
    %1407 = vmatprep.subr.mxu0 0.0
    %v1408 = vand.u32 %v1078, 4294901760
    %1409 = vmatpush1.msra.mxu0 %v1408
    %1410 = vmatprep.subr.mxu0 0.0
    %v1411 = vand.u32 %v1077, 4294901760
    %1412 = vmatpush1.msra.mxu0 %v1411
    %1413 = vmatprep.subr.mxu0 0.0
    %v1414 = vand.u32 %v1076, 4294901760
    %1415 = vmatpush1.msra.mxu0 %v1414
    %1416 = vmatprep.subr.mxu0 0.0
    %v1417 = vand.u32 %v1075, 4294901760
    %1418 = vmatpush1.msra.mxu0 %v1417
    %1419 = vmatprep.subr.mxu0 0.0
    %v1420 = vand.u32 %v1074, 4294901760
    %1421 = vmatpush1.msra.mxu0 %v1420
    %1422 = vmatprep.subr.mxu0 0.0
    %v1423 = vand.u32 %v1073, 4294901760
    %1424 = vmatpush1.msra.mxu0 %v1423
    %1425 = vmatprep.subr.mxu0 0.0
    %v1426 = vand.u32 %v1072, 4294901760
    %1427 = vmatpush1.msra.mxu0 %v1426
    %1428 = vmatprep.subr.mxu0 0.0
    %v1429 = vand.u32 %v1071, 4294901760
    %1430 = vmatpush1.msra.mxu0 %v1429
    %1431 = vmatprep.subr.mxu0 0.0
    %1432 = vmatpush2.msra.mxu0 0.0
    %1433 = vmatprep.subr.mxu0 0.0
    %1434 = vmatpush2.msra.mxu0 0.0
    %1435 = vmatprep.subr.mxu0 0.0
    %1436 = vmatpush2.msra.mxu0 0.0
    %1437 = vmatprep.subr.mxu0 0.0
    %1438 = vmatpush2.msra.mxu0 0.0
    %1439 = vmatprep.subr.mxu0 0.0
    %1440 = vmatpush2.msra.mxu0 0.0
    %1441 = vmatprep.subr.mxu0 0.0
    %1442 = vmatpush2.msra.mxu0 0.0
    %1443 = vmatprep.subr.mxu0 0.0
    %1444 = vmatpush2.msra.mxu0 0.0
    %1445 = vmatprep.subr.mxu0 0.0
    %1446 = vmatpush2.msra.mxu0 0.0
    %1447 = vmatprep.subr.mxu0 0.0
    %1448 = vmatpush2.msra.mxu0 0.0
    %1449 = vmatprep.subr.mxu0 0.0
    %1450 = vmatpush2.msra.mxu0 0.0
    %1451 = vmatprep.subr.mxu0 0.0
    %1452 = vmatpush2.msra.mxu0 0.0
    %1453 = vmatprep.subr.mxu0 0.0
    %1454 = vmatpush2.msra.mxu0 0.0
    %1455 = vmatprep.subr.mxu0 0.0
    %1456 = vmatpush2.msra.mxu0 0.0
    %1457 = vmatprep.subr.mxu0 0.0
    %1458 = vmatpush2.msra.mxu0 0.0
    %1459 = vmatprep.subr.mxu0 0.0
    %1460 = vmatpush2.msra.mxu0 0.0
    %1461 = vmatprep.subr.mxu0 0.0
    %1462 = vmatpush2.msra.mxu0 0.0
    %1463 = vmatprep.mubr.f32.mxu0 0.0
    %v1464 = vand.u32 %v1081, 4294901760
    %v1465 = vsub.f32 %v1081, %v1464
    %v1466 = vand.u32 %v1465, 4294901760
    %1467 = vmatmul.mubr.f32.gmra.mxu0 %v1466
    %v1468 = vpop.f32.mrf.mxu0
    %v1469 = vadd.f32 %v1381, %v1468
    %v1470 = vpop.f32.mrf.mxu0
    %1471 = vmatprep.mubr.f32.mxu0 0.0
    %v1472 = vand.u32 %v1084, 4294901760
    %v1473 = vsub.f32 %v1084, %v1472
    %v1474 = vand.u32 %v1473, 4294901760
    %1475 = vmatmul.mubr.f32.gmra.mxu0 %v1474
    %v1476 = vpop.f32.mrf.mxu0
    %v1477 = vadd.f32 %v1388, %v1476
    %v1478 = vpop.f32.mrf.mxu0
    %1479 = vdwg.mxu0
    %1480 = vmatprep.subr.mxu0 0.0
    %1481 = vmatpush1.msra.mxu0 0.0
    %1482 = vmatprep.subr.mxu0 0.0
    %1483 = vmatpush1.msra.mxu0 0.0
    %1484 = vmatprep.subr.mxu0 0.0
    %1485 = vmatpush1.msra.mxu0 0.0
    %1486 = vmatprep.subr.mxu0 0.0
    %1487 = vmatpush1.msra.mxu0 0.0
    %1488 = vmatprep.subr.mxu0 0.0
    %1489 = vmatpush1.msra.mxu0 0.0
    %1490 = vmatprep.subr.mxu0 0.0
    %1491 = vmatpush1.msra.mxu0 0.0
    %1492 = vmatprep.subr.mxu0 0.0
    %1493 = vmatpush1.msra.mxu0 0.0
    %1494 = vmatprep.subr.mxu0 0.0
    %1495 = vmatpush1.msra.mxu0 0.0
    %1496 = vmatprep.subr.mxu0 0.0
    %v1497 = vand.u32 %v1078, 4294901760
    %v1498 = vsub.f32 %v1078, %v1497
    %v1499 = vand.u32 %v1498, 4294901760
    %1500 = vmatpush1.msra.mxu0 %v1499
    %1501 = vmatprep.subr.mxu0 0.0
    %v1502 = vand.u32 %v1077, 4294901760
    %v1503 = vsub.f32 %v1077, %v1502
    %v1504 = vand.u32 %v1503, 4294901760
    %1505 = vmatpush1.msra.mxu0 %v1504
    %1506 = vmatprep.subr.mxu0 0.0
    %v1507 = vand.u32 %v1076, 4294901760
    %v1508 = vsub.f32 %v1076, %v1507
    %v1509 = vand.u32 %v1508, 4294901760
    %1510 = vmatpush1.msra.mxu0 %v1509
    %1511 = vmatprep.subr.mxu0 0.0
    %v1512 = vand.u32 %v1075, 4294901760
    %v1513 = vsub.f32 %v1075, %v1512
    %v1514 = vand.u32 %v1513, 4294901760
    %1515 = vmatpush1.msra.mxu0 %v1514
    %1516 = vmatprep.subr.mxu0 0.0
    %v1517 = vand.u32 %v1074, 4294901760
    %v1518 = vsub.f32 %v1074, %v1517
    %v1519 = vand.u32 %v1518, 4294901760
    %1520 = vmatpush1.msra.mxu0 %v1519
    %1521 = vmatprep.subr.mxu0 0.0
    %v1522 = vand.u32 %v1073, 4294901760
    %v1523 = vsub.f32 %v1073, %v1522
    %v1524 = vand.u32 %v1523, 4294901760
    %1525 = vmatpush1.msra.mxu0 %v1524
    %1526 = vmatprep.subr.mxu0 0.0
    %v1527 = vand.u32 %v1072, 4294901760
    %v1528 = vsub.f32 %v1072, %v1527
    %v1529 = vand.u32 %v1528, 4294901760
    %1530 = vmatpush1.msra.mxu0 %v1529
    %1531 = vmatprep.subr.mxu0 0.0
    %v1532 = vand.u32 %v1071, 4294901760
    %v1533 = vsub.f32 %v1071, %v1532
    %v1534 = vand.u32 %v1533, 4294901760
    %1535 = vmatpush1.msra.mxu0 %v1534
    %1536 = vmatprep.subr.mxu0 0.0
    %1537 = vmatpush2.msra.mxu0 0.0
    %1538 = vmatprep.subr.mxu0 0.0
    %1539 = vmatpush2.msra.mxu0 0.0
    %1540 = vmatprep.subr.mxu0 0.0
    %1541 = vmatpush2.msra.mxu0 0.0
    %1542 = vmatprep.subr.mxu0 0.0
    %1543 = vmatpush2.msra.mxu0 0.0
    %1544 = vmatprep.subr.mxu0 0.0
    %1545 = vmatpush2.msra.mxu0 0.0
    %1546 = vmatprep.subr.mxu0 0.0
    %1547 = vmatpush2.msra.mxu0 0.0
    %1548 = vmatprep.subr.mxu0 0.0
    %1549 = vmatpush2.msra.mxu0 0.0
    %1550 = vmatprep.subr.mxu0 0.0
    %1551 = vmatpush2.msra.mxu0 0.0
    %1552 = vmatprep.subr.mxu0 0.0
    %1553 = vmatpush2.msra.mxu0 0.0
    %1554 = vmatprep.subr.mxu0 0.0
    %1555 = vmatpush2.msra.mxu0 0.0
    %1556 = vmatprep.subr.mxu0 0.0
    %1557 = vmatpush2.msra.mxu0 0.0
    %1558 = vmatprep.subr.mxu0 0.0
    %1559 = vmatpush2.msra.mxu0 0.0
    %1560 = vmatprep.subr.mxu0 0.0
    %1561 = vmatpush2.msra.mxu0 0.0
    %1562 = vmatprep.subr.mxu0 0.0
    %1563 = vmatpush2.msra.mxu0 0.0
    %1564 = vmatprep.subr.mxu0 0.0
    %1565 = vmatpush2.msra.mxu0 0.0
    %1566 = vmatprep.subr.mxu0 0.0
    %1567 = vmatpush2.msra.mxu0 0.0
    %1568 = vmatprep.mubr.f32.mxu0 0.0
    %v1569 = vand.u32 %v1081, 4294901760
    %1570 = vmatmul.mubr.f32.gmra.mxu0 %v1569
    %v1571 = vpop.f32.mrf.mxu0
    %v1572 = vadd.f32 %v1469, %v1571
    %v1573 = vpop.f32.mrf.mxu0
    %1574 = vmatprep.mubr.f32.mxu0 0.0
    %v1575 = vand.u32 %v1084, 4294901760
    %1576 = vmatmul.mubr.f32.gmra.mxu0 %v1575
    %v1577 = vpop.f32.mrf.mxu0
    %v1578 = vadd.f32 %v1477, %v1577
    %v1579 = vpop.f32.mrf.mxu0
    %1580 = vdwg.mxu0
    %1581 = vmatprep.subr.mxu0 0.0
    %1582 = vmatpush1.msra.mxu0 0.0
    %1583 = vmatprep.subr.mxu0 0.0
    %1584 = vmatpush1.msra.mxu0 0.0
    %1585 = vmatprep.subr.mxu0 0.0
    %1586 = vmatpush1.msra.mxu0 0.0
    %1587 = vmatprep.subr.mxu0 0.0
    %1588 = vmatpush1.msra.mxu0 0.0
    %1589 = vmatprep.subr.mxu0 0.0
    %1590 = vmatpush1.msra.mxu0 0.0
    %1591 = vmatprep.subr.mxu0 0.0
    %1592 = vmatpush1.msra.mxu0 0.0
    %1593 = vmatprep.subr.mxu0 0.0
    %1594 = vmatpush1.msra.mxu0 0.0
    %1595 = vmatprep.subr.mxu0 0.0
    %1596 = vmatpush1.msra.mxu0 0.0
    %1597 = vmatprep.subr.mxu0 0.0
    %v1598 = vand.u32 %v1078, 4294901760
    %1599 = vmatpush1.msra.mxu0 %v1598
    %1600 = vmatprep.subr.mxu0 0.0
    %v1601 = vand.u32 %v1077, 4294901760
    %1602 = vmatpush1.msra.mxu0 %v1601
    %1603 = vmatprep.subr.mxu0 0.0
    %v1604 = vand.u32 %v1076, 4294901760
    %1605 = vmatpush1.msra.mxu0 %v1604
    %1606 = vmatprep.subr.mxu0 0.0
    %v1607 = vand.u32 %v1075, 4294901760
    %1608 = vmatpush1.msra.mxu0 %v1607
    %1609 = vmatprep.subr.mxu0 0.0
    %v1610 = vand.u32 %v1074, 4294901760
    %1611 = vmatpush1.msra.mxu0 %v1610
    %1612 = vmatprep.subr.mxu0 0.0
    %v1613 = vand.u32 %v1073, 4294901760
    %1614 = vmatpush1.msra.mxu0 %v1613
    %1615 = vmatprep.subr.mxu0 0.0
    %v1616 = vand.u32 %v1072, 4294901760
    %1617 = vmatpush1.msra.mxu0 %v1616
    %1618 = vmatprep.subr.mxu0 0.0
    %v1619 = vand.u32 %v1071, 4294901760
    %1620 = vmatpush1.msra.mxu0 %v1619
    %1621 = vmatprep.subr.mxu0 0.0
    %1622 = vmatpush2.msra.mxu0 0.0
    %1623 = vmatprep.subr.mxu0 0.0
    %1624 = vmatpush2.msra.mxu0 0.0
    %1625 = vmatprep.subr.mxu0 0.0
    %1626 = vmatpush2.msra.mxu0 0.0
    %1627 = vmatprep.subr.mxu0 0.0
    %1628 = vmatpush2.msra.mxu0 0.0
    %1629 = vmatprep.subr.mxu0 0.0
    %1630 = vmatpush2.msra.mxu0 0.0
    %1631 = vmatprep.subr.mxu0 0.0
    %1632 = vmatpush2.msra.mxu0 0.0
    %1633 = vmatprep.subr.mxu0 0.0
    %1634 = vmatpush2.msra.mxu0 0.0
    %1635 = vmatprep.subr.mxu0 0.0
    %1636 = vmatpush2.msra.mxu0 0.0
    %1637 = vmatprep.subr.mxu0 0.0
    %1638 = vmatpush2.msra.mxu0 0.0
    %1639 = vmatprep.subr.mxu0 0.0
    %1640 = vmatpush2.msra.mxu0 0.0
    %1641 = vmatprep.subr.mxu0 0.0
    %1642 = vmatpush2.msra.mxu0 0.0
    %1643 = vmatprep.subr.mxu0 0.0
    %1644 = vmatpush2.msra.mxu0 0.0
    %1645 = vmatprep.subr.mxu0 0.0
    %1646 = vmatpush2.msra.mxu0 0.0
    %1647 = vmatprep.subr.mxu0 0.0
    %1648 = vmatpush2.msra.mxu0 0.0
    %1649 = vmatprep.subr.mxu0 0.0
    %1650 = vmatpush2.msra.mxu0 0.0
    %1651 = vmatprep.subr.mxu0 0.0
    %1652 = vmatpush2.msra.mxu0 0.0
    %1653 = vmatprep.mubr.f32.mxu0 0.0
    %v1654 = vand.u32 %v1081, 4294901760
    %1655 = vmatmul.mubr.f32.gmra.mxu0 %v1654
    %v1656 = vpop.f32.mrf.mxu0
    %v1657 = vadd.f32 %v1572, %v1656
    %v1658 = vpop.f32.mrf.mxu0
    %1659 = vmatprep.mubr.f32.mxu0 0.0
    %v1660 = vand.u32 %v1084, 4294901760
    %1661 = vmatmul.mubr.f32.gmra.mxu0 %v1660
    %v1662 = vpop.f32.mrf.mxu0
    %v1663 = vadd.f32 %v1578, %v1662
    %v1664 = vpop.f32.mrf.mxu0
    %1665 = vdwg.mxu0
    %v1666 = vadd.f32 %v86, %v1049
    %v1667 = vadd.f32 %v87, %v1056
    %v1668 = vadd.f32 %v1666, %v1657
    %v1669 = vadd.f32 %v1667, %v1663
    %v1670 = vld [vmem:[%s6] sm:$0xff]
    %v1671 = vadd.f32 %v1668, %v1670
    %v1672 = vadd.f32 %v1669, %v1670
    %vm1673 = vcmask 261120
    %1674 = vst.msk [vmem:[#allocation2] sm:$0xff] %vm1673, %v1671
    %1675 = vst.msk [vmem:[#allocation2 + $0x8] sm:$0xff] %vm1673, %v1672
    // Predicated region
    $region30: #{tpu_custom_call.1} parent=1 // pred_check
      _
    $region31: #{tpu_custom_call.1} parent=1 // pred_check_branch
      %1677 = sbr.rel (0) target = $region33
    $region32: #{tpu_custom_call.1} parent=1 // pred_region
      %s1679 = ssub.s32 256, 256
      %1680 = vsyncadd [#allocation3], %s1679
      %s1681 = sshll.u32 [#allocation2], 4
      %s1682 = int_to_ptr.vmem [resolvable:$true] %s1681
      %1687 = dma.vmem_to_hbm [thread:$0]  %s1682, 256, %s7, [#allocation3], 128, 128, 8
    $region33: #{tpu_custom_call.1} parent=1 // pred_fallthru
      _
    // Predicated region
    $region34: #{tpu_custom_call.1} parent=1 // pred_check
      _
    $region35: #{tpu_custom_call.1} parent=1 // pred_check_branch
      %1689 = sbr.rel (0) target = $region37
    $region36: #{tpu_custom_call.1} parent=1 // pred_region
      %1690 = dma.done [#allocation3], 256
    $region37: #{tpu_custom_call.1} parent=1 // pred_fallthru
      _
    %1691 = vsyncpa [#allocation3], 1

</llo_original>
